<compile_context>
chip_gen: v5e
topology: v5e:2x2
jax: 0.10.0
libtpu: 0.0.40
codegen_flags: <defaults>
</compile_context>

<pallas_src>
import jax
import jax.numpy as jnp
from jax.experimental import pallas as pl
from jax.experimental.pallas import tpu as pltpu


_CONTRACT_LAST = (((1,), (1,)), ((), ()))  # contract dim 1 of both operands (a @ b.T)


def novelty_kernel(ctx_ref, doc_ref, w_ref, out_ref):
    """One tile of TN context documents.

    ctx_ref: (TN, S, H) bf16  context token features (streamed per grid step)
    doc_ref: (1, E)     f32   precomputed document embedding (VMEM-resident)
    w_ref:   (H, E)     bf16  encoder projection weight      (VMEM-resident)
    out_ref: (1, TN)    f32   cosine similarities, lane-dense (N on lanes)
    """
    # Sum-pool over tokens (the 1/S of a mean-pool cancels in cosine sim);
    # accumulate the pool in f32, cast back to bf16 for the MXU.
    ctx_pooled = jnp.sum(ctx_ref[...], axis=1, dtype=jnp.float32)          # (TN, H)
    ctx_emb = jnp.dot(ctx_pooled.astype(jnp.bfloat16), w_ref[...],
                      preferred_element_type=jnp.float32)                  # (TN, E)

    doc_emb = doc_ref[...]                                                 # (1, E)
    doc_sq = jnp.sum(doc_emb * doc_emb, axis=-1, keepdims=True)            # (1, 1)

    # Lane-dense (1, TN) results: contract over E on the MXU (doc @ ctx.T and
    # ones @ (ctx*ctx).T) instead of cross-lane VPU/XLU reductions.
    dots = jax.lax.dot_general(doc_emb, ctx_emb, _CONTRACT_LAST,
                               preferred_element_type=jnp.float32)         # (1, TN)
    ones_row = jnp.ones((1, ctx_emb.shape[-1]), jnp.float32)
    ctx_sq = jax.lax.dot_general(ones_row, ctx_emb * ctx_emb, _CONTRACT_LAST,
                                 preferred_element_type=jnp.float32)       # (1, TN)

    # cos = dot / max(|ctx|*|doc|, 1e-8) == dot * rsqrt(max(ctx_sq*doc_sq, 1e-16))
    denom_sq = jnp.maximum(ctx_sq * doc_sq, jnp.float32(1e-16))
    out_ref[...] = dots * jax.lax.rsqrt(denom_sq)


def novelty_detector(ctx_tokens, doc_tokens, w, *, tn=128):
    """Cosine similarity of the document embedding vs each context embedding.

    ctx_tokens: (N, S, H) f32, doc_tokens: (1, S, H) f32, w: (H, E) f32.
    Returns (N,) f32 scores.

    `tn` context rows stream per grid step; size it so
    2 (double buffer) * tn*S*H*2B + H*E*2B fits in scoped VMEM
    (limit set to 48 MiB here; v7x has 64 MiB physical vs 128 MiB on v5e/v6e).
    """
    N, S, H = ctx_tokens.shape
    E = w.shape[1]

    # Constant across all context tiles -> hoisted out of the kernel loop.
    doc_emb = jnp.sum(doc_tokens.astype(jnp.float32), axis=1) @ w.astype(jnp.float32)  # (1, E)

    # Pad N so the lane-dense output tiles cleanly; padded (zero) rows produce
    # score 0 and are sliced off below.
    n_pad = pl.cdiv(N, tn) * tn
    if n_pad != N:
        ctx_tokens = jnp.pad(ctx_tokens, ((0, n_pad - N), (0, 0), (0, 0)))

    # bf16 halves HBM bytes of the dominant stream (ctx tokens) and doubles
    # MXU rate on v6e/v7x; accumulation stays f32 inside the kernel.
    ctx_bf16 = ctx_tokens.astype(jnp.bfloat16)
    w_bf16 = w.astype(jnp.bfloat16)

    out = pl.pallas_call(
        novelty_kernel,
        out_shape=jax.ShapeDtypeStruct((1, n_pad), jnp.float32),
        grid_spec=pltpu.PrefetchScalarGridSpec(
            num_scalar_prefetch=0,
            grid=(n_pad // tn,),
            in_specs=[
                pl.BlockSpec((tn, S, H), lambda i: (i, 0, 0)),  # streamed / pipelined
                pl.BlockSpec((1, E), lambda i: (0, 0)),         # VMEM-resident
                pl.BlockSpec((H, E), lambda i: (0, 0)),         # VMEM-resident
            ],
            out_specs=pl.BlockSpec((1, tn), lambda i: (0, i)),  # lane-dense output
        ),
        compiler_params=pltpu.CompilerParams(
            dimension_semantics=("parallel",),     # megacore split on v7x
            vmem_limit_bytes=48 * 1024 * 1024,     # above 16/32 MiB scoped defaults
        ),
    )(ctx_bf16, doc_emb, w_bf16)
    return out[0, :N]


def _reference(ctx_tokens, doc_tokens, w):
    ctx_emb = jnp.mean(ctx_tokens, axis=1) @ w
    doc_emb = jnp.mean(doc_tokens, axis=1) @ w
    dots = jnp.sum(ctx_emb * doc_emb, axis=-1)
    denom = jnp.maximum(
        jnp.linalg.norm(ctx_emb, axis=-1) * jnp.linalg.norm(doc_emb, axis=-1),
        1e-8)
    return dots / denom


if __name__ == "__main__":
    key = jax.random.PRNGKey(0)
    k_ctx, k_doc, k_w = jax.random.split(key, 3)

    # Lane-aligned small shapes (H, E multiples of 128); N tiled by tn=128.
    N_CTX, SEQ, HIDDEN, EMB = 256, 8, 128, 128

    # Synthetic token-level features for context documents and the document.
    ctx_tokens = jax.random.normal(k_ctx, (N_CTX, SEQ, HIDDEN), dtype=jnp.float32)
    doc_tokens = jax.random.normal(k_doc, (1, SEQ, HIDDEN), dtype=jnp.float32)
    # Deterministic encoder projection weight.
    w = jax.random.normal(k_w, (HIDDEN, EMB), dtype=jnp.float32) * 0.05

    scores = novelty_detector(ctx_tokens, doc_tokens, w, tn=128)
    jax.block_until_ready(scores)

    ref = _reference(ctx_tokens, doc_tokens, w)
    assert scores.shape == (N_CTX,)
    # bf16 streaming with f32 accumulation -> loosened tolerance vs pure f32.
    assert jnp.allclose(scores, ref, atol=2e-2, rtol=2e-2), (
        float(jnp.max(jnp.abs(scores - ref))))

    print("KERNEL_OK")
</pallas_src>

<mosaic_0001>
module attributes {stable_mosaic.version = 11 : i64} {
  func.func @novelty_kernel(%arg0: i32, %arg1: memref<128x8x128xbf16, #tpu.memory_space<vmem>>, %arg2: memref<1x128xf32, #tpu.memory_space<vmem>>, %arg3: memref<128x128xbf16, #tpu.memory_space<vmem>>, %arg4: memref<1x128xf32, #tpu.memory_space<vmem>>) attributes {dimension_semantics = [#tpu.dimension_semantics<parallel>], iteration_bounds = array<i64: 2>, scalar_prefetch = 0 : i64, scratch_operands = 0 : i64, tpu.core_type = #tpu.core_type<tc>, window_params = [{transform_indices = @transform_0, window_bounds = array<i64: 128, 8, 128>}, {pipeline_mode = #tpu.pipeline_mode<synchronous>, transform_indices = @transform_1, window_bounds = array<i64: 1, 128>}, {pipeline_mode = #tpu.pipeline_mode<synchronous>, transform_indices = @transform_2, window_bounds = array<i64: 128, 128>}, {transform_indices = @transform_3, window_bounds = array<i64: 1, 128>}]} {
    %c0 = arith.constant 0 : index
    %c0_0 = arith.constant 0 : index
    %c0_1 = arith.constant 0 : index
    %0 = vector.load %arg1[%c0, %c0_0, %c0_1] : memref<128x8x128xbf16, #tpu.memory_space<vmem>>, vector<128x8x128xbf16>
    %1 = arith.extf %0 : vector<128x8x128xbf16> to vector<128x8x128xf32>
    %cst = arith.constant dense<0.000000e+00> : vector<128x128xf32>
    %2 = vector.multi_reduction <add>, %1, %cst [1] : vector<128x8x128xf32> to vector<128x128xf32>
    %3 = arith.truncf %2 : vector<128x128xf32> to vector<128x128xbf16>
    %c0_2 = arith.constant 0 : index
    %c0_3 = arith.constant 0 : index
    %4 = vector.load %arg3[%c0_2, %c0_3] : memref<128x128xbf16, #tpu.memory_space<vmem>>, vector<128x128xbf16>
    %cst_4 = arith.constant dense<0.000000e+00> : vector<128x128xf32>
    %5 = tpu.matmul %3, %4, %cst_4 {dimension_numbers = #tpu.dot_dimension_numbers<[1], [0], [0], [1], [0, 0, 1, 1], [], []>} : vector<128x128xbf16>, vector<128x128xbf16>, vector<128x128xf32> -> vector<128x128xf32>
    %c0_5 = arith.constant 0 : index
    %c0_6 = arith.constant 0 : index
    %6 = vector.load %arg2[%c0_5, %c0_6] : memref<1x128xf32, #tpu.memory_space<vmem>>, vector<1x128xf32>
    %7 = arith.mulf %6, %6 : vector<1x128xf32>
    %cst_7 = arith.constant dense<0.000000e+00> : vector<1xf32>
    %8 = vector.multi_reduction <add>, %7, %cst_7 [1] : vector<1x128xf32> to vector<1xf32>
    %9 = vector.shape_cast %8 : vector<1xf32> to vector<1x1xf32>
    %cst_8 = arith.constant dense<0.000000e+00> : vector<1x128xf32>
    %10 = tpu.matmul %6, %5, %cst_8 {dimension_numbers = #tpu.dot_dimension_numbers<[1], [1], [0], [0], [0, 0, 1, 0], [], []>} : vector<1x128xf32>, vector<128x128xf32>, vector<1x128xf32> -> vector<1x128xf32>
    %cst_9 = arith.constant 1.000000e+00 : f32
    %11 = vector.broadcast %cst_9 : f32 to vector<1x128xf32>
    %12 = arith.mulf %5, %5 : vector<128x128xf32>
    %cst_10 = arith.constant dense<0.000000e+00> : vector<1x128xf32>
    %13 = tpu.matmul %11, %12, %cst_10 {dimension_numbers = #tpu.dot_dimension_numbers<[1], [1], [0], [0], [0, 0, 1, 0], [], []>} : vector<1x128xf32>, vector<128x128xf32>, vector<1x128xf32> -> vector<1x128xf32>
    %14 = vector.broadcast %9 : vector<1x1xf32> to vector<1x128xf32>
    %15 = arith.mulf %13, %14 : vector<1x128xf32>
    %cst_11 = arith.constant 1.000000e-16 : f32
    %16 = vector.broadcast %cst_11 : f32 to vector<1x128xf32>
    %17 = arith.maximumf %15, %16 : vector<1x128xf32>
    %18 = math.rsqrt %17 : vector<1x128xf32>
    %19 = arith.mulf %10, %18 : vector<1x128xf32>
    %c0_12 = arith.constant 0 : index
    %c0_13 = arith.constant 0 : index
    %20 = vector.load %arg4[%c0_12, %c0_13] : memref<1x128xf32, #tpu.memory_space<vmem>>, vector<1x128xf32>
    tpu.vector_store %arg4[%c0_12, %c0_13], %19 {strides = array<i32>} : memref<1x128xf32, #tpu.memory_space<vmem>>, vector<1x128xf32>,
    return
  }
  func.func @transform_0(%arg0: i32) -> (i32, i32, i32) {
    %c0_i32 = arith.constant 0 : i32
    %c0_i32_0 = arith.constant 0 : i32
    %c0_i32_1 = arith.constant 0 : i32
    return %arg0, %c0_i32, %c0_i32_0 : i32, i32, i32
  }
  func.func @transform_1(%arg0: i32) -> (i32, i32) {
    %c0_i32 = arith.constant 0 : i32
    %c0_i32_0 = arith.constant 0 : i32
    %c0_i32_1 = arith.constant 0 : i32
    return %c0_i32, %c0_i32_0 : i32, i32
  }
  func.func @transform_2(%arg0: i32) -> (i32, i32) {
    %c0_i32 = arith.constant 0 : i32
    %c0_i32_0 = arith.constant 0 : i32
    %c0_i32_1 = arith.constant 0 : i32
    return %c0_i32, %c0_i32_0 : i32, i32
  }
  func.func @transform_3(%arg0: i32) -> (i32, i32) {
    %c0_i32 = arith.constant 0 : i32
    %c0_i32_0 = arith.constant 0 : i32
    return %c0_i32, %arg0 : i32, i32
  }
}

</mosaic_0001>

<llo_original>
// kernel: tpu_custom_call.1
$region0: #{tpu_custom_call.1}
  #allocation0 [shape = 'u32[]', space=smem, size = 0x4, offset = 0x4, fixed_abs, tag = 'smem constant byte address 0x4 - core index']
  #allocation1 [shape = 'u32[72,128]{1,0:T(1,128)}', space=vmem, size = 0x9000, scoped, tag = 'internal scratch']
  %s0 = inlined_call_operand.hbm [shape: bf16[256,8,128], index: 0, kind: input, shape index: {}]
  %s1 = inlined_call_operand.hbm [shape: f32[1,128], index: 1, kind: input, shape index: {}]
  %s2 = inlined_call_operand.hbm [shape: bf16[128,128], index: 2, kind: input, shape index: {}]
  %s3 = inlined_call_operand.hbm [shape: f32[1,256], index: 3, kind: output, shape index: {}]
  %s4 = sld [smem:[#allocation0]]
  $region57: #{tpu_custom_call.1} parent=0
    _
  %s6 = ssub.s32 1, %s4
  %s7 = scalar_select 0, %s6, %s4
  $region1: #{tpu_custom_call.1} parent=0
    #allocation2 [shape = 'u8[524288]{0}', space=vmem, size = 0x80000, scoped, tag = 'input window, operand 0']
    #allocation3 [shape = 's32[2]{0}', space=sflag, size = 0x8, scoped, tag = 'scoped memory for tpu_custom_call.1']
    #allocation4 [shape = 's32[2]{0}', space=sflag, size = 0x8, scoped, tag = 'scoped memory for tpu_custom_call.1']
    #allocation5 [shape = 'u8[512]{0}', space=vmem, size = 0x400, scoped, tag = 'input window, operand 1, single buffered']
    #allocation6 [shape = 's32[1]{0}', space=sflag, size = 0x4, scoped, tag = 'scoped memory for tpu_custom_call.1']
    #allocation7 [shape = 'u8[32768]{0}', space=vmem, size = 0x8000, scoped, tag = 'input window, operand 2, single buffered']
    #allocation8 [shape = 'u8[1024]{0}', space=vmem, size = 0x400, scoped, tag = 'output window, operand 0']
    %8 = vsyncpa [#allocation3], 0
    %s9 = scalar_lea.sflag [#allocation3], 1
    %10 = vsyncpa %s9, 0
    %11 = vsyncpa [#allocation6], 0
    %12 = vsyncpa [#allocation4], 0
    %s13 = scalar_lea.sflag [#allocation4], 1
    %14 = vsyncpa %s13, 0
    loop: start=0, step=1, limit=4
    $region2: #{tpu_custom_call.1} parent=1 // loop_pre_header
      _
    $region3: #{tpu_custom_call.1} parent=1 // loop_header
      %s16 = sphi 0, %s20
      %p17 = scmp.ge.s32.totalorder %s16, 4
      %s26 = sphi 0, %s28
      %s29 = sphi 0, %s26
      %s30 = sphi 0, %s29
      %s46 = sphi 0, %s30
      %s50 = sphi 0, %s50
      %s52 = sphi 0, %s50
      %s53 = sphi 0, %s52
      %s67 = sphi 0, %s53
      %s71 = sphi 0, %s71
      %s73 = sphi 0, %s71
      %s74 = sphi 0, %s73
      %s88 = sphi 0, %s74
      %s94 = sphi 0, %s96
      %s97 = sphi 0, %s94
      %s98 = sphi 0, %s97
      %s114 = sphi 0, %s98
    $region4: #{tpu_custom_call.1} parent=1 // loop_header_branch
      %19 = sbr.rel (%p17) target = $region8
    $region5: #{tpu_custom_call.1} parent=1 // loop_body
      %s21 = ssub.s32 %s16, 1
      %s22 = ssub.s32 %s16, 2
      %s23 = sadd.s32 %s16, 1
      %s24 = ssub.s32 %s16, %s23
      %p25 = scmp.eq.s32.totalorder %s24, 0
      %s27 = sadd.s32 %s26, 1
      %s28 = scalar_select %p25, %s26, %s27
      %p31 = pneg %p25
      %p32 = scmp.eq.s32.totalorder %s16, 1
      %p33 = por %p31, %p32
      %p34 = scmp.ne.s32.totalorder %s26, %s29
      %p35 = scmp.eq.s32.totalorder %s16, 0
      %p36 = por %p34, %p35
      %p37 = scmp.ne.s32.totalorder %s26, %s29
      %p38 = scmp.eq.s32.totalorder %s21, 1
      %p39 = por %p37, %p38
      %p40 = scmp.ne.s32.totalorder %s29, %s30
      %p41 = scmp.eq.s32.totalorder %s21, 0
      %p42 = por %p40, %p41
      %p43 = scmp.ne.s32.totalorder %s29, %s30
      %p44 = scmp.eq.s32.totalorder %s22, 1
      %p45 = por %p43, %p44
      %p47 = scmp.ne.s32.totalorder %s30, %s46
      %p48 = scmp.eq.s32.totalorder %s22, 0
      %p49 = por %p47, %p48
      %s51 = sadd.s32 %s50, 1
      %p54 = scmp.eq.s32.totalorder %s16, 1
      %p55 = scmp.ne.s32.totalorder %s50, %s52
      %p56 = scmp.eq.s32.totalorder %s16, 0
      %p57 = por %p55, %p56
      %p58 = scmp.ne.s32.totalorder %s50, %s52
      %p59 = scmp.eq.s32.totalorder %s21, 1
      %p60 = por %p58, %p59
      %p61 = scmp.ne.s32.totalorder %s52, %s53
      %p62 = scmp.eq.s32.totalorder %s21, 0
      %p63 = por %p61, %p62
      %p64 = scmp.ne.s32.totalorder %s52, %s53
      %p65 = scmp.eq.s32.totalorder %s22, 1
      %p66 = por %p64, %p65
      %p68 = scmp.ne.s32.totalorder %s53, %s67
      %p69 = scmp.eq.s32.totalorder %s22, 0
      %p70 = por %p68, %p69
      %s72 = sadd.s32 %s71, 1
      %p75 = scmp.eq.s32.totalorder %s16, 1
      %p76 = scmp.ne.s32.totalorder %s71, %s73
      %p77 = scmp.eq.s32.totalorder %s16, 0
      %p78 = por %p76, %p77
      %p79 = scmp.ne.s32.totalorder %s71, %s73
      %p80 = scmp.eq.s32.totalorder %s21, 1
      %p81 = por %p79, %p80
      %p82 = scmp.ne.s32.totalorder %s73, %s74
      %p83 = scmp.eq.s32.totalorder %s21, 0
      %p84 = por %p82, %p83
      %p85 = scmp.ne.s32.totalorder %s73, %s74
      %p86 = scmp.eq.s32.totalorder %s22, 1
      %p87 = por %p85, %p86
      %p89 = scmp.ne.s32.totalorder %s74, %s88
      %p90 = scmp.eq.s32.totalorder %s22, 0
      %p91 = por %p89, %p90
      %s92 = ssub.s32 %s16, %s23
      %p93 = scmp.eq.s32.totalorder %s92, 0
      %s95 = sadd.s32 %s94, 1
      %s96 = scalar_select %p93, %s94, %s95
      %p99 = pneg %p93
      %p100 = scmp.eq.s32.totalorder %s16, 1
      %p101 = por %p99, %p100
      %p102 = scmp.ne.s32.totalorder %s94, %s97
      %p103 = scmp.eq.s32.totalorder %s16, 0
      %p104 = por %p102, %p103
      %p105 = scmp.ne.s32.totalorder %s94, %s97
      %p106 = scmp.eq.s32.totalorder %s21, 1
      %p107 = por %p105, %p106
      %p108 = scmp.ne.s32.totalorder %s97, %s98
      %p109 = scmp.eq.s32.totalorder %s21, 0
      %p110 = por %p108, %p109
      %p111 = scmp.ne.s32.totalorder %s97, %s98
      %p112 = scmp.eq.s32.totalorder %s22, 1
      %p113 = por %p111, %p112
      %p115 = scmp.ne.s32.totalorder %s98, %s114
      %p116 = scmp.eq.s32.totalorder %s22, 0
      %p117 = por %p115, %p116
      %p118 = scmp.le.s32.totalorder 1, %s16
      %p119 = scmp.lt.s32.totalorder %s16, 3
      %p120 = pnand %p118, %p119
      %p121 = pneg %p120
      // Predicated region
      $region9: #{tpu_custom_call.1} parent=5 // pred_check
        _
      $region10: #{tpu_custom_call.1} parent=5 // pred_check_branch
        %123 = sbr.rel (%p120) target = $region12
      $region11: #{tpu_custom_call.1} parent=5 // pred_region
        %s124 = ssub.s32 %s16, 1
        // Predicated region
        $region13: #{tpu_custom_call.1} parent=11 // pred_check
          %p125 = pneg %p63
        $region14: #{tpu_custom_call.1} parent=11 // pred_check_branch
          %127 = sbr.rel (%p125) target = $region16
        $region15: #{tpu_custom_call.1} parent=11 // pred_region
          %129 = vsyncadd [#allocation6], 0
          %s131 = sshll.u32 %s1, 4
          %s132 = int_to_ptr.hbm [resolvable:$true] %s131
          %s133 = sshll.u32 [#allocation5], 4
          %s134 = int_to_ptr.vmem [resolvable:$true] %s133
          %136 = dma.hbm_to_vmem [thread:$0]  %s132, 16, %s134, [#allocation6]
        $region16: #{tpu_custom_call.1} parent=11 // pred_fallthru
          _
        // Predicated region
        $region17: #{tpu_custom_call.1} parent=11 // pred_check
          %p137 = pneg %p84
        $region18: #{tpu_custom_call.1} parent=11 // pred_check_branch
          %139 = sbr.rel (%p137) target = $region20
        $region19: #{tpu_custom_call.1} parent=11 // pred_region
          %141 = vsyncadd [#allocation6], 0
          %s142 = sshll.u32 %s2, 4
          %s143 = int_to_ptr.hbm [resolvable:$true] %s142
          %s144 = sshll.u32 [#allocation7], 4
          %s145 = int_to_ptr.vmem [resolvable:$true] %s144
          %150 = dma.hbm_to_vmem [thread:$0]  %s143, 1024, %s145, [#allocation6], 64, 64, 4
        $region20: #{tpu_custom_call.1} parent=11 // pred_fallthru
          _
      $region12: #{tpu_custom_call.1} parent=5 // pred_fallthru
        _
      %p151 = scmp.lt.s32.totalorder %s16, 2
      // Predicated region
      $region21: #{tpu_custom_call.1} parent=5 // pred_check
        %p152 = pneg %p151
      $region22: #{tpu_custom_call.1} parent=5 // pred_check_branch
        %154 = sbr.rel (%p152) target = $region24
      $region23: #{tpu_custom_call.1} parent=5 // pred_region
        // Predicated region
        $region25: #{tpu_custom_call.1} parent=23 // pred_check
          %p155 = pneg %p36
        $region26: #{tpu_custom_call.1} parent=23 // pred_check_branch
          %157 = sbr.rel (%p155) target = $region28
        $region27: #{tpu_custom_call.1} parent=23 // pred_region
          %s158 = sand.u32 %s26, 1
          %s159 = scalar_lea.sflag [#allocation3], %s158
          %s160 = sand.u32 %s26, 1
          %s161 = smul.addr %s160, 512
          %s162 = scalar_lea.vmem [#allocation2], %s161
          %s163 = smul.u32 128, %s16
          %165 = vsyncadd %s159, 0
          %s166 = smul.addr %s163, 4
          %s167 = scalar_lea.hbm %s0, %s166
          %s168 = sshll.u32 %s167, 4
          %s169 = int_to_ptr.hbm [resolvable:$true] %s168
          %s170 = sshll.u32 %s162, 4
          %s171 = int_to_ptr.vmem [resolvable:$true] %s170
          %176 = dma.hbm_to_vmem [thread:$0]  %s169, 8192, %s171, %s159, 64, 64, 4
        $region28: #{tpu_custom_call.1} parent=23 // pred_fallthru
          _
      $region24: #{tpu_custom_call.1} parent=5 // pred_fallthru
        _
      %p177 = scmp.le.s32.totalorder 1, %s16
      %p178 = scmp.lt.s32.totalorder %s16, 3
      %p179 = pnand %p177, %p178
      %p180 = pneg %p179
      // Predicated region
      $region29: #{tpu_custom_call.1} parent=5 // pred_check
        _
      $region30: #{tpu_custom_call.1} parent=5 // pred_check_branch
        %182 = sbr.rel (%p179) target = $region32
      $region31: #{tpu_custom_call.1} parent=5 // pred_region
        %s183 = ssub.s32 %s16, 1
        %s184 = sand.u32 %s29, 1
        %s185 = scalar_lea.sflag [#allocation3], %s184
        %s186 = sand.u32 %s29, 1
        %s187 = smul.addr %s186, 512
        %s188 = scalar_lea.vmem [#allocation2], %s187
        // Predicated region
        $region33: #{tpu_custom_call.1} parent=31 // pred_check
          %p189 = pneg %p42
        $region34: #{tpu_custom_call.1} parent=31 // pred_check_branch
          %191 = sbr.rel (%p189) target = $region36
        $region35: #{tpu_custom_call.1} parent=31 // pred_region
          %193 = dma.done %s185, 8192
        $region36: #{tpu_custom_call.1} parent=31 // pred_fallthru
          _
        // Predicated region
        $region37: #{tpu_custom_call.1} parent=31 // pred_check
          %p194 = pneg %p63
        $region38: #{tpu_custom_call.1} parent=31 // pred_check_branch
          %196 = sbr.rel (%p194) target = $region40
        $region39: #{tpu_custom_call.1} parent=31 // pred_region
          %198 = dma.done [#allocation6], 16
        $region40: #{tpu_custom_call.1} parent=31 // pred_fallthru
          _
        // Predicated region
        $region41: #{tpu_custom_call.1} parent=31 // pred_check
          %p199 = pneg %p84
        $region42: #{tpu_custom_call.1} parent=31 // pred_check_branch
          %201 = sbr.rel (%p199) target = $region44
        $region43: #{tpu_custom_call.1} parent=31 // pred_region
          %203 = dma.done [#allocation6], 1024
        $region44: #{tpu_custom_call.1} parent=31 // pred_fallthru
          _
        %s204 = sand.u32 %s29, 1
        %s205 = scalar_lea.sflag [#allocation3], %s204
        %s206 = sand.u32 %s29, 1
        %s207 = smul.addr %s206, 512
        %s208 = scalar_lea.vmem [#allocation2], %s207
        %p209 = pneg %p42
        %p210 = pneg %p39
        %p211 = pneg %p63
        %p212 = pneg %p60
        %p213 = pneg %p84
        %p214 = pneg %p81
        %p215 = pneg %p110
        %p216 = pneg %p107
        %s217 = sand.u32 %s97, 1
        %s218 = scalar_lea.sflag [#allocation4], %s217
        %s219 = sand.u32 %s97, 1
        %s220 = scalar_lea.vmem [#allocation8], %s219
        %s221 = smul.u32 128, %s21
        %v222 = vld [vmem:[%s188] sm:$0xf]
        %v223 = vld [vmem:[%s188 + $0x4] sm:$0xf]
        %v224 = vld [vmem:[%s188 + $0x8] sm:$0xf]
        %v225 = vld [vmem:[%s188 + $0xc] sm:$0xf]
        %v226 = vld [vmem:[%s188 + $0x10] sm:$0xf]
        %v227 = vld [vmem:[%s188 + $0x14] sm:$0xf]
        %v228 = vld [vmem:[%s188 + $0x18] sm:$0xf]
        %v229 = vld [vmem:[%s188 + $0x1c] sm:$0xf]
        %v230 = vld [vmem:[%s188 + $0x20] sm:$0xf]
        %v231 = vld [vmem:[%s188 + $0x24] sm:$0xf]
        %v232 = vld [vmem:[%s188 + $0x28] sm:$0xf]
        %v233 = vld [vmem:[%s188 + $0x2c] sm:$0xf]
        %v234 = vld [vmem:[%s188 + $0x30] sm:$0xf]
        %v235 = vld [vmem:[%s188 + $0x34] sm:$0xf]
        %v236 = vld [vmem:[%s188 + $0x38] sm:$0xf]
        %v237 = vld [vmem:[%s188 + $0x3c] sm:$0xf]
        %v238 = vld [vmem:[%s188 + $0x40] sm:$0xf]
        %v239 = vld [vmem:[%s188 + $0x44] sm:$0xf]
        %v240 = vld [vmem:[%s188 + $0x48] sm:$0xf]
        %v241 = vld [vmem:[%s188 + $0x4c] sm:$0xf]
        %v242 = vld [vmem:[%s188 + $0x50] sm:$0xf]
        %v243 = vld [vmem:[%s188 + $0x54] sm:$0xf]
        %v244 = vld [vmem:[%s188 + $0x58] sm:$0xf]
        %v245 = vld [vmem:[%s188 + $0x5c] sm:$0xf]
        %v246 = vld [vmem:[%s188 + $0x60] sm:$0xf]
        %v247 = vld [vmem:[%s188 + $0x64] sm:$0xf]
        %v248 = vld [vmem:[%s188 + $0x68] sm:$0xf]
        %v249 = vld [vmem:[%s188 + $0x6c] sm:$0xf]
        %v250 = vld [vmem:[%s188 + $0x70] sm:$0xf]
        %v251 = vld [vmem:[%s188 + $0x74] sm:$0xf]
        %v252 = vld [vmem:[%s188 + $0x78] sm:$0xf]
        %v253 = vld [vmem:[%s188 + $0x7c] sm:$0xf]
        %v254 = vld [vmem:[%s188 + $0x80] sm:$0xf]
        %v255 = vld [vmem:[%s188 + $0x84] sm:$0xf]
        %v256 = vld [vmem:[%s188 + $0x88] sm:$0xf]
        %v257 = vld [vmem:[%s188 + $0x8c] sm:$0xf]
        %v258 = vld [vmem:[%s188 + $0x90] sm:$0xf]
        %v259 = vld [vmem:[%s188 + $0x94] sm:$0xf]
        %v260 = vld [vmem:[%s188 + $0x98] sm:$0xf]
        %v261 = vld [vmem:[%s188 + $0x9c] sm:$0xf]
        %v262 = vld [vmem:[%s188 + $0xa0] sm:$0xf]
        %v263 = vld [vmem:[%s188 + $0xa4] sm:$0xf]
        %v264 = vld [vmem:[%s188 + $0xa8] sm:$0xf]
        %v265 = vld [vmem:[%s188 + $0xac] sm:$0xf]
        %v266 = vld [vmem:[%s188 + $0xb0] sm:$0xf]
        %v267 = vld [vmem:[%s188 + $0xb4] sm:$0xf]
        %v268 = vld [vmem:[%s188 + $0xb8] sm:$0xf]
        %v269 = vld [vmem:[%s188 + $0xbc] sm:$0xf]
        %v270 = vld [vmem:[%s188 + $0xc0] sm:$0xf]
        %v271 = vld [vmem:[%s188 + $0xc4] sm:$0xf]
        %v272 = vld [vmem:[%s188 + $0xc8] sm:$0xf]
        %v273 = vld [vmem:[%s188 + $0xcc] sm:$0xf]
        %v274 = vld [vmem:[%s188 + $0xd0] sm:$0xf]
        %v275 = vld [vmem:[%s188 + $0xd4] sm:$0xf]
        %v276 = vld [vmem:[%s188 + $0xd8] sm:$0xf]
        %v277 = vld [vmem:[%s188 + $0xdc] sm:$0xf]
        %v278 = vld [vmem:[%s188 + $0xe0] sm:$0xf]
        %v279 = vld [vmem:[%s188 + $0xe4] sm:$0xf]
        %v280 = vld [vmem:[%s188 + $0xe8] sm:$0xf]
        %v281 = vld [vmem:[%s188 + $0xec] sm:$0xf]
        %v282 = vld [vmem:[%s188 + $0xf0] sm:$0xf]
        %v283 = vld [vmem:[%s188 + $0xf4] sm:$0xf]
        %v284 = vld [vmem:[%s188 + $0xf8] sm:$0xf]
        %v285 = vld [vmem:[%s188 + $0xfc] sm:$0xf]
        %v286 = vld [vmem:[%s188 + $0x100] sm:$0xf]
        %v287 = vld [vmem:[%s188 + $0x104] sm:$0xf]
        %v288 = vld [vmem:[%s188 + $0x108] sm:$0xf]
        %v289 = vld [vmem:[%s188 + $0x10c] sm:$0xf]
        %v290 = vld [vmem:[%s188 + $0x110] sm:$0xf]
        %v291 = vld [vmem:[%s188 + $0x114] sm:$0xf]
        %v292 = vld [vmem:[%s188 + $0x118] sm:$0xf]
        %v293 = vld [vmem:[%s188 + $0x11c] sm:$0xf]
        %v294 = vld [vmem:[%s188 + $0x120] sm:$0xf]
        %v295 = vld [vmem:[%s188 + $0x124] sm:$0xf]
        %v296 = vld [vmem:[%s188 + $0x128] sm:$0xf]
        %v297 = vld [vmem:[%s188 + $0x12c] sm:$0xf]
        %v298 = vld [vmem:[%s188 + $0x130] sm:$0xf]
        %v299 = vld [vmem:[%s188 + $0x134] sm:$0xf]
        %v300 = vld [vmem:[%s188 + $0x138] sm:$0xf]
        %v301 = vld [vmem:[%s188 + $0x13c] sm:$0xf]
        %v302 = vld [vmem:[%s188 + $0x140] sm:$0xf]
        %v303 = vld [vmem:[%s188 + $0x144] sm:$0xf]
        %v304 = vld [vmem:[%s188 + $0x148] sm:$0xf]
        %v305 = vld [vmem:[%s188 + $0x14c] sm:$0xf]
        %v306 = vld [vmem:[%s188 + $0x150] sm:$0xf]
        %v307 = vld [vmem:[%s188 + $0x154] sm:$0xf]
        %v308 = vld [vmem:[%s188 + $0x158] sm:$0xf]
        %v309 = vld [vmem:[%s188 + $0x15c] sm:$0xf]
        %v310 = vld [vmem:[%s188 + $0x160] sm:$0xf]
        %v311 = vld [vmem:[%s188 + $0x164] sm:$0xf]
        %v312 = vld [vmem:[%s188 + $0x168] sm:$0xf]
        %v313 = vld [vmem:[%s188 + $0x16c] sm:$0xf]
        %v314 = vld [vmem:[%s188 + $0x170] sm:$0xf]
        %v315 = vld [vmem:[%s188 + $0x174] sm:$0xf]
        %v316 = vld [vmem:[%s188 + $0x178] sm:$0xf]
        %v317 = vld [vmem:[%s188 + $0x17c] sm:$0xf]
        %v318 = vld [vmem:[%s188 + $0x180] sm:$0xf]
        %v319 = vld [vmem:[%s188 + $0x184] sm:$0xf]
        %v320 = vld [vmem:[%s188 + $0x188] sm:$0xf]
        %v321 = vld [vmem:[%s188 + $0x18c] sm:$0xf]
        %v322 = vld [vmem:[%s188 + $0x190] sm:$0xf]
        %v323 = vld [vmem:[%s188 + $0x194] sm:$0xf]
        %v324 = vld [vmem:[%s188 + $0x198] sm:$0xf]
        %v325 = vld [vmem:[%s188 + $0x19c] sm:$0xf]
        %v326 = vld [vmem:[%s188 + $0x1a0] sm:$0xf]
        %v327 = vld [vmem:[%s188 + $0x1a4] sm:$0xf]
        %v328 = vld [vmem:[%s188 + $0x1a8] sm:$0xf]
        %v329 = vld [vmem:[%s188 + $0x1ac] sm:$0xf]
        %v330 = vld [vmem:[%s188 + $0x1b0] sm:$0xf]
        %v331 = vld [vmem:[%s188 + $0x1b4] sm:$0xf]
        %v332 = vld [vmem:[%s188 + $0x1b8] sm:$0xf]
        %v333 = vld [vmem:[%s188 + $0x1bc] sm:$0xf]
        %v334 = vld [vmem:[%s188 + $0x1c0] sm:$0xf]
        %v335 = vld [vmem:[%s188 + $0x1c4] sm:$0xf]
        %v336 = vld [vmem:[%s188 + $0x1c8] sm:$0xf]
        %v337 = vld [vmem:[%s188 + $0x1cc] sm:$0xf]
        %v338 = vld [vmem:[%s188 + $0x1d0] sm:$0xf]
        %v339 = vld [vmem:[%s188 + $0x1d4] sm:$0xf]
        %v340 = vld [vmem:[%s188 + $0x1d8] sm:$0xf]
        %v341 = vld [vmem:[%s188 + $0x1dc] sm:$0xf]
        %v342 = vld [vmem:[%s188 + $0x1e0] sm:$0xf]
        %v343 = vld [vmem:[%s188 + $0x1e4] sm:$0xf]
        %v344 = vld [vmem:[%s188 + $0x1e8] sm:$0xf]
        %v345 = vld [vmem:[%s188 + $0x1ec] sm:$0xf]
        %v346 = vld [vmem:[%s188 + $0x1f0] sm:$0xf]
        %v347 = vld [vmem:[%s188 + $0x1f4] sm:$0xf]
        %v348 = vld [vmem:[%s188 + $0x1f8] sm:$0xf]
        %v349 = vld [vmem:[%s188 + $0x1fc] sm:$0xf]
        %v350 = vunpack.c.l.bf16 %v222
        %v351 = vunpack.c.l.bf16 %v223
        %v352 = vunpack.c.l.bf16 %v224
        %v353 = vunpack.c.l.bf16 %v225
        %v354 = vunpack.c.l.bf16 %v226
        %v355 = vunpack.c.l.bf16 %v227
        %v356 = vunpack.c.l.bf16 %v228
        %v357 = vunpack.c.l.bf16 %v229
        %v358 = vunpack.c.l.bf16 %v230
        %v359 = vunpack.c.l.bf16 %v231
        %v360 = vunpack.c.l.bf16 %v232
        %v361 = vunpack.c.l.bf16 %v233
        %v362 = vunpack.c.l.bf16 %v234
        %v363 = vunpack.c.l.bf16 %v235
        %v364 = vunpack.c.l.bf16 %v236
        %v365 = vunpack.c.l.bf16 %v237
        %v366 = vunpack.c.l.bf16 %v238
        %v367 = vunpack.c.l.bf16 %v239
        %v368 = vunpack.c.l.bf16 %v240
        %v369 = vunpack.c.l.bf16 %v241
        %v370 = vunpack.c.l.bf16 %v242
        %v371 = vunpack.c.l.bf16 %v243
        %v372 = vunpack.c.l.bf16 %v244
        %v373 = vunpack.c.l.bf16 %v245
        %v374 = vunpack.c.l.bf16 %v246
        %v375 = vunpack.c.l.bf16 %v247
        %v376 = vunpack.c.l.bf16 %v248
        %v377 = vunpack.c.l.bf16 %v249
        %v378 = vunpack.c.l.bf16 %v250
        %v379 = vunpack.c.l.bf16 %v251
        %v380 = vunpack.c.l.bf16 %v252
        %v381 = vunpack.c.l.bf16 %v253
        %v382 = vunpack.c.l.bf16 %v254
        %v383 = vunpack.c.l.bf16 %v255
        %v384 = vunpack.c.l.bf16 %v256
        %v385 = vunpack.c.l.bf16 %v257
        %v386 = vunpack.c.l.bf16 %v258
        %v387 = vunpack.c.l.bf16 %v259
        %v388 = vunpack.c.l.bf16 %v260
        %v389 = vunpack.c.l.bf16 %v261
        %v390 = vunpack.c.l.bf16 %v262
        %v391 = vunpack.c.l.bf16 %v263
        %v392 = vunpack.c.l.bf16 %v264
        %v393 = vunpack.c.l.bf16 %v265
        %v394 = vunpack.c.l.bf16 %v266
        %v395 = vunpack.c.l.bf16 %v267
        %v396 = vunpack.c.l.bf16 %v268
        %v397 = vunpack.c.l.bf16 %v269
        %v398 = vunpack.c.l.bf16 %v270
        %v399 = vunpack.c.l.bf16 %v271
        %v400 = vunpack.c.l.bf16 %v272
        %v401 = vunpack.c.l.bf16 %v273
        %v402 = vunpack.c.l.bf16 %v274
        %v403 = vunpack.c.l.bf16 %v275
        %v404 = vunpack.c.l.bf16 %v276
        %v405 = vunpack.c.l.bf16 %v277
        %v406 = vunpack.c.l.bf16 %v278
        %v407 = vunpack.c.l.bf16 %v279
        %v408 = vunpack.c.l.bf16 %v280
        %v409 = vunpack.c.l.bf16 %v281
        %v410 = vunpack.c.l.bf16 %v282
        %v411 = vunpack.c.l.bf16 %v283
        %v412 = vunpack.c.l.bf16 %v284
        %v413 = vunpack.c.l.bf16 %v285
        %v414 = vunpack.c.l.bf16 %v286
        %v415 = vunpack.c.l.bf16 %v287
        %v416 = vunpack.c.l.bf16 %v288
        %v417 = vunpack.c.l.bf16 %v289
        %v418 = vunpack.c.l.bf16 %v290
        %v419 = vunpack.c.l.bf16 %v291
        %v420 = vunpack.c.l.bf16 %v292
        %v421 = vunpack.c.l.bf16 %v293
        %v422 = vunpack.c.l.bf16 %v294
        %v423 = vunpack.c.l.bf16 %v295
        %v424 = vunpack.c.l.bf16 %v296
        %v425 = vunpack.c.l.bf16 %v297
        %v426 = vunpack.c.l.bf16 %v298
        %v427 = vunpack.c.l.bf16 %v299
        %v428 = vunpack.c.l.bf16 %v300
        %v429 = vunpack.c.l.bf16 %v301
        %v430 = vunpack.c.l.bf16 %v302
        %v431 = vunpack.c.l.bf16 %v303
        %v432 = vunpack.c.l.bf16 %v304
        %v433 = vunpack.c.l.bf16 %v305
        %v434 = vunpack.c.l.bf16 %v306
        %v435 = vunpack.c.l.bf16 %v307
        %v436 = vunpack.c.l.bf16 %v308
        %v437 = vunpack.c.l.bf16 %v309
        %v438 = vunpack.c.l.bf16 %v310
        %v439 = vunpack.c.l.bf16 %v311
        %v440 = vunpack.c.l.bf16 %v312
        %v441 = vunpack.c.l.bf16 %v313
        %v442 = vunpack.c.l.bf16 %v314
        %v443 = vunpack.c.l.bf16 %v315
        %v444 = vunpack.c.l.bf16 %v316
        %v445 = vunpack.c.l.bf16 %v317
        %v446 = vunpack.c.l.bf16 %v318
        %v447 = vunpack.c.l.bf16 %v319
        %v448 = vunpack.c.l.bf16 %v320
        %v449 = vunpack.c.l.bf16 %v321
        %v450 = vunpack.c.l.bf16 %v322
        %v451 = vunpack.c.l.bf16 %v323
        %v452 = vunpack.c.l.bf16 %v324
        %v453 = vunpack.c.l.bf16 %v325
        %v454 = vunpack.c.l.bf16 %v326
        %v455 = vunpack.c.l.bf16 %v327
        %v456 = vunpack.c.l.bf16 %v328
        %v457 = vunpack.c.l.bf16 %v329
        %v458 = vunpack.c.l.bf16 %v330
        %v459 = vunpack.c.l.bf16 %v331
        %v460 = vunpack.c.l.bf16 %v332
        %v461 = vunpack.c.l.bf16 %v333
        %v462 = vunpack.c.l.bf16 %v334
        %v463 = vunpack.c.l.bf16 %v335
        %v464 = vunpack.c.l.bf16 %v336
        %v465 = vunpack.c.l.bf16 %v337
        %v466 = vunpack.c.l.bf16 %v338
        %v467 = vunpack.c.l.bf16 %v339
        %v468 = vunpack.c.l.bf16 %v340
        %v469 = vunpack.c.l.bf16 %v341
        %v470 = vunpack.c.l.bf16 %v342
        %v471 = vunpack.c.l.bf16 %v343
        %v472 = vunpack.c.l.bf16 %v344
        %v473 = vunpack.c.l.bf16 %v345
        %v474 = vunpack.c.l.bf16 %v346
        %v475 = vunpack.c.l.bf16 %v347
        %v476 = vunpack.c.l.bf16 %v348
        %v477 = vunpack.c.l.bf16 %v349
        %v478 = vrot.slane %v350, 4
        %v479 = vadd.f32 %v350, %v478
        %v480 = vrot.slane %v479, 2
        %v481 = vadd.f32 %v479, %v480
        %v482 = vrot.slane %v481, 1
        %v483 = vadd.f32 %v481, %v482
        %v484 = vrot.slane %v351, 4
        %v485 = vadd.f32 %v351, %v484
        %v486 = vrot.slane %v485, 2
        %v487 = vadd.f32 %v485, %v486
        %v488 = vrot.slane %v487, 1
        %v489 = vadd.f32 %v487, %v488
        %v490 = vrot.slane %v352, 4
        %v491 = vadd.f32 %v352, %v490
        %v492 = vrot.slane %v491, 2
        %v493 = vadd.f32 %v491, %v492
        %v494 = vrot.slane %v493, 1
        %v495 = vadd.f32 %v493, %v494
        %v496 = vrot.slane %v353, 4
        %v497 = vadd.f32 %v353, %v496
        %v498 = vrot.slane %v497, 2
        %v499 = vadd.f32 %v497, %v498
        %v500 = vrot.slane %v499, 1
        %v501 = vadd.f32 %v499, %v500
        %v502 = vrot.slane %v354, 4
        %v503 = vadd.f32 %v354, %v502
        %v504 = vrot.slane %v503, 2
        %v505 = vadd.f32 %v503, %v504
        %v506 = vrot.slane %v505, 1
        %v507 = vadd.f32 %v505, %v506
        %v508 = vrot.slane %v355, 4
        %v509 = vadd.f32 %v355, %v508
        %v510 = vrot.slane %v509, 2
        %v511 = vadd.f32 %v509, %v510
        %v512 = vrot.slane %v511, 1
        %v513 = vadd.f32 %v511, %v512
        %v514 = vrot.slane %v356, 4
        %v515 = vadd.f32 %v356, %v514
        %v516 = vrot.slane %v515, 2
        %v517 = vadd.f32 %v515, %v516
        %v518 = vrot.slane %v517, 1
        %v519 = vadd.f32 %v517, %v518
        %v520 = vrot.slane %v357, 4
        %v521 = vadd.f32 %v357, %v520
        %v522 = vrot.slane %v521, 2
        %v523 = vadd.f32 %v521, %v522
        %v524 = vrot.slane %v523, 1
        %v525 = vadd.f32 %v523, %v524
        %v526 = vrot.slane %v358, 4
        %v527 = vadd.f32 %v358, %v526
        %v528 = vrot.slane %v527, 2
        %v529 = vadd.f32 %v527, %v528
        %v530 = vrot.slane %v529, 1
        %v531 = vadd.f32 %v529, %v530
        %v532 = vrot.slane %v359, 4
        %v533 = vadd.f32 %v359, %v532
        %v534 = vrot.slane %v533, 2
        %v535 = vadd.f32 %v533, %v534
        %v536 = vrot.slane %v535, 1
        %v537 = vadd.f32 %v535, %v536
        %v538 = vrot.slane %v360, 4
        %v539 = vadd.f32 %v360, %v538
        %v540 = vrot.slane %v539, 2
        %v541 = vadd.f32 %v539, %v540
        %v542 = vrot.slane %v541, 1
        %v543 = vadd.f32 %v541, %v542
        %v544 = vrot.slane %v361, 4
        %v545 = vadd.f32 %v361, %v544
        %v546 = vrot.slane %v545, 2
        %v547 = vadd.f32 %v545, %v546
        %v548 = vrot.slane %v547, 1
        %v549 = vadd.f32 %v547, %v548
        %v550 = vrot.slane %v362, 4
        %v551 = vadd.f32 %v362, %v550
        %v552 = vrot.slane %v551, 2
        %v553 = vadd.f32 %v551, %v552
        %v554 = vrot.slane %v553, 1
        %v555 = vadd.f32 %v553, %v554
        %v556 = vrot.slane %v363, 4
        %v557 = vadd.f32 %v363, %v556
        %v558 = vrot.slane %v557, 2
        %v559 = vadd.f32 %v557, %v558
        %v560 = vrot.slane %v559, 1
        %v561 = vadd.f32 %v559, %v560
        %v562 = vrot.slane %v364, 4
        %v563 = vadd.f32 %v364, %v562
        %v564 = vrot.slane %v563, 2
        %v565 = vadd.f32 %v563, %v564
        %v566 = vrot.slane %v565, 1
        %v567 = vadd.f32 %v565, %v566
        %v568 = vrot.slane %v365, 4
        %v569 = vadd.f32 %v365, %v568
        %v570 = vrot.slane %v569, 2
        %v571 = vadd.f32 %v569, %v570
        %v572 = vrot.slane %v571, 1
        %v573 = vadd.f32 %v571, %v572
        %v574 = vrot.slane %v366, 4
        %v575 = vadd.f32 %v366, %v574
        %v576 = vrot.slane %v575, 2
        %v577 = vadd.f32 %v575, %v576
        %v578 = vrot.slane %v577, 1
        %v579 = vadd.f32 %v577, %v578
        %v580 = vrot.slane %v367, 4
        %v581 = vadd.f32 %v367, %v580
        %v582 = vrot.slane %v581, 2
        %v583 = vadd.f32 %v581, %v582
        %v584 = vrot.slane %v583, 1
        %v585 = vadd.f32 %v583, %v584
        %v586 = vrot.slane %v368, 4
        %v587 = vadd.f32 %v368, %v586
        %v588 = vrot.slane %v587, 2
        %v589 = vadd.f32 %v587, %v588
        %v590 = vrot.slane %v589, 1
        %v591 = vadd.f32 %v589, %v590
        %v592 = vrot.slane %v369, 4
        %v593 = vadd.f32 %v369, %v592
        %v594 = vrot.slane %v593, 2
        %v595 = vadd.f32 %v593, %v594
        %v596 = vrot.slane %v595, 1
        %v597 = vadd.f32 %v595, %v596
        %v598 = vrot.slane %v370, 4
        %v599 = vadd.f32 %v370, %v598
        %v600 = vrot.slane %v599, 2
        %v601 = vadd.f32 %v599, %v600
        %v602 = vrot.slane %v601, 1
        %v603 = vadd.f32 %v601, %v602
        %v604 = vrot.slane %v371, 4
        %v605 = vadd.f32 %v371, %v604
        %v606 = vrot.slane %v605, 2
        %v607 = vadd.f32 %v605, %v606
        %v608 = vrot.slane %v607, 1
        %v609 = vadd.f32 %v607, %v608
        %v610 = vrot.slane %v372, 4
        %v611 = vadd.f32 %v372, %v610
        %v612 = vrot.slane %v611, 2
        %v613 = vadd.f32 %v611, %v612
        %v614 = vrot.slane %v613, 1
        %v615 = vadd.f32 %v613, %v614
        %v616 = vrot.slane %v373, 4
        %v617 = vadd.f32 %v373, %v616
        %v618 = vrot.slane %v617, 2
        %v619 = vadd.f32 %v617, %v618
        %v620 = vrot.slane %v619, 1
        %v621 = vadd.f32 %v619, %v620
        %v622 = vrot.slane %v374, 4
        %v623 = vadd.f32 %v374, %v622
        %v624 = vrot.slane %v623, 2
        %v625 = vadd.f32 %v623, %v624
        %v626 = vrot.slane %v625, 1
        %v627 = vadd.f32 %v625, %v626
        %v628 = vrot.slane %v375, 4
        %v629 = vadd.f32 %v375, %v628
        %v630 = vrot.slane %v629, 2
        %v631 = vadd.f32 %v629, %v630
        %v632 = vrot.slane %v631, 1
        %v633 = vadd.f32 %v631, %v632
        %v634 = vrot.slane %v376, 4
        %v635 = vadd.f32 %v376, %v634
        %v636 = vrot.slane %v635, 2
        %v637 = vadd.f32 %v635, %v636
        %v638 = vrot.slane %v637, 1
        %v639 = vadd.f32 %v637, %v638
        %v640 = vrot.slane %v377, 4
        %v641 = vadd.f32 %v377, %v640
        %v642 = vrot.slane %v641, 2
        %v643 = vadd.f32 %v641, %v642
        %v644 = vrot.slane %v643, 1
        %v645 = vadd.f32 %v643, %v644
        %v646 = vrot.slane %v378, 4
        %v647 = vadd.f32 %v378, %v646
        %v648 = vrot.slane %v647, 2
        %v649 = vadd.f32 %v647, %v648
        %v650 = vrot.slane %v649, 1
        %v651 = vadd.f32 %v649, %v650
        %v652 = vrot.slane %v379, 4
        %v653 = vadd.f32 %v379, %v652
        %v654 = vrot.slane %v653, 2
        %v655 = vadd.f32 %v653, %v654
        %v656 = vrot.slane %v655, 1
        %v657 = vadd.f32 %v655, %v656
        %v658 = vrot.slane %v380, 4
        %v659 = vadd.f32 %v380, %v658
        %v660 = vrot.slane %v659, 2
        %v661 = vadd.f32 %v659, %v660
        %v662 = vrot.slane %v661, 1
        %v663 = vadd.f32 %v661, %v662
        %v664 = vrot.slane %v381, 4
        %v665 = vadd.f32 %v381, %v664
        %v666 = vrot.slane %v665, 2
        %v667 = vadd.f32 %v665, %v666
        %v668 = vrot.slane %v667, 1
        %v669 = vadd.f32 %v667, %v668
        %v670 = vrot.slane %v382, 4
        %v671 = vadd.f32 %v382, %v670
        %v672 = vrot.slane %v671, 2
        %v673 = vadd.f32 %v671, %v672
        %v674 = vrot.slane %v673, 1
        %v675 = vadd.f32 %v673, %v674
        %v676 = vrot.slane %v383, 4
        %v677 = vadd.f32 %v383, %v676
        %v678 = vrot.slane %v677, 2
        %v679 = vadd.f32 %v677, %v678
        %v680 = vrot.slane %v679, 1
        %v681 = vadd.f32 %v679, %v680
        %v682 = vrot.slane %v384, 4
        %v683 = vadd.f32 %v384, %v682
        %v684 = vrot.slane %v683, 2
        %v685 = vadd.f32 %v683, %v684
        %v686 = vrot.slane %v685, 1
        %v687 = vadd.f32 %v685, %v686
        %v688 = vrot.slane %v385, 4
        %v689 = vadd.f32 %v385, %v688
        %v690 = vrot.slane %v689, 2
        %v691 = vadd.f32 %v689, %v690
        %v692 = vrot.slane %v691, 1
        %v693 = vadd.f32 %v691, %v692
        %v694 = vrot.slane %v386, 4
        %v695 = vadd.f32 %v386, %v694
        %v696 = vrot.slane %v695, 2
        %v697 = vadd.f32 %v695, %v696
        %v698 = vrot.slane %v697, 1
        %v699 = vadd.f32 %v697, %v698
        %v700 = vrot.slane %v387, 4
        %v701 = vadd.f32 %v387, %v700
        %v702 = vrot.slane %v701, 2
        %v703 = vadd.f32 %v701, %v702
        %v704 = vrot.slane %v703, 1
        %v705 = vadd.f32 %v703, %v704
        %v706 = vrot.slane %v388, 4
        %v707 = vadd.f32 %v388, %v706
        %v708 = vrot.slane %v707, 2
        %v709 = vadd.f32 %v707, %v708
        %v710 = vrot.slane %v709, 1
        %v711 = vadd.f32 %v709, %v710
        %v712 = vrot.slane %v389, 4
        %v713 = vadd.f32 %v389, %v712
        %v714 = vrot.slane %v713, 2
        %v715 = vadd.f32 %v713, %v714
        %v716 = vrot.slane %v715, 1
        %v717 = vadd.f32 %v715, %v716
        %v718 = vrot.slane %v390, 4
        %v719 = vadd.f32 %v390, %v718
        %v720 = vrot.slane %v719, 2
        %v721 = vadd.f32 %v719, %v720
        %v722 = vrot.slane %v721, 1
        %v723 = vadd.f32 %v721, %v722
        %v724 = vrot.slane %v391, 4
        %v725 = vadd.f32 %v391, %v724
        %v726 = vrot.slane %v725, 2
        %v727 = vadd.f32 %v725, %v726
        %v728 = vrot.slane %v727, 1
        %v729 = vadd.f32 %v727, %v728
        %v730 = vrot.slane %v392, 4
        %v731 = vadd.f32 %v392, %v730
        %v732 = vrot.slane %v731, 2
        %v733 = vadd.f32 %v731, %v732
        %v734 = vrot.slane %v733, 1
        %v735 = vadd.f32 %v733, %v734
        %v736 = vrot.slane %v393, 4
        %v737 = vadd.f32 %v393, %v736
        %v738 = vrot.slane %v737, 2
        %v739 = vadd.f32 %v737, %v738
        %v740 = vrot.slane %v739, 1
        %v741 = vadd.f32 %v739, %v740
        %v742 = vrot.slane %v394, 4
        %v743 = vadd.f32 %v394, %v742
        %v744 = vrot.slane %v743, 2
        %v745 = vadd.f32 %v743, %v744
        %v746 = vrot.slane %v745, 1
        %v747 = vadd.f32 %v745, %v746
        %v748 = vrot.slane %v395, 4
        %v749 = vadd.f32 %v395, %v748
        %v750 = vrot.slane %v749, 2
        %v751 = vadd.f32 %v749, %v750
        %v752 = vrot.slane %v751, 1
        %v753 = vadd.f32 %v751, %v752
        %v754 = vrot.slane %v396, 4
        %v755 = vadd.f32 %v396, %v754
        %v756 = vrot.slane %v755, 2
        %v757 = vadd.f32 %v755, %v756
        %v758 = vrot.slane %v757, 1
        %v759 = vadd.f32 %v757, %v758
        %v760 = vrot.slane %v397, 4
        %v761 = vadd.f32 %v397, %v760
        %v762 = vrot.slane %v761, 2
        %v763 = vadd.f32 %v761, %v762
        %v764 = vrot.slane %v763, 1
        %v765 = vadd.f32 %v763, %v764
        %v766 = vrot.slane %v398, 4
        %v767 = vadd.f32 %v398, %v766
        %v768 = vrot.slane %v767, 2
        %v769 = vadd.f32 %v767, %v768
        %v770 = vrot.slane %v769, 1
        %v771 = vadd.f32 %v769, %v770
        %v772 = vrot.slane %v399, 4
        %v773 = vadd.f32 %v399, %v772
        %v774 = vrot.slane %v773, 2
        %v775 = vadd.f32 %v773, %v774
        %v776 = vrot.slane %v775, 1
        %v777 = vadd.f32 %v775, %v776
        %v778 = vrot.slane %v400, 4
        %v779 = vadd.f32 %v400, %v778
        %v780 = vrot.slane %v779, 2
        %v781 = vadd.f32 %v779, %v780
        %v782 = vrot.slane %v781, 1
        %v783 = vadd.f32 %v781, %v782
        %v784 = vrot.slane %v401, 4
        %v785 = vadd.f32 %v401, %v784
        %v786 = vrot.slane %v785, 2
        %v787 = vadd.f32 %v785, %v786
        %v788 = vrot.slane %v787, 1
        %v789 = vadd.f32 %v787, %v788
        %v790 = vrot.slane %v402, 4
        %v791 = vadd.f32 %v402, %v790
        %v792 = vrot.slane %v791, 2
        %v793 = vadd.f32 %v791, %v792
        %v794 = vrot.slane %v793, 1
        %v795 = vadd.f32 %v793, %v794
        %v796 = vrot.slane %v403, 4
        %v797 = vadd.f32 %v403, %v796
        %v798 = vrot.slane %v797, 2
        %v799 = vadd.f32 %v797, %v798
        %v800 = vrot.slane %v799, 1
        %v801 = vadd.f32 %v799, %v800
        %v802 = vrot.slane %v404, 4
        %v803 = vadd.f32 %v404, %v802
        %v804 = vrot.slane %v803, 2
        %v805 = vadd.f32 %v803, %v804
        %v806 = vrot.slane %v805, 1
        %v807 = vadd.f32 %v805, %v806
        %v808 = vrot.slane %v405, 4
        %v809 = vadd.f32 %v405, %v808
        %v810 = vrot.slane %v809, 2
        %v811 = vadd.f32 %v809, %v810
        %v812 = vrot.slane %v811, 1
        %v813 = vadd.f32 %v811, %v812
        %v814 = vrot.slane %v406, 4
        %v815 = vadd.f32 %v406, %v814
        %v816 = vrot.slane %v815, 2
        %v817 = vadd.f32 %v815, %v816
        %v818 = vrot.slane %v817, 1
        %v819 = vadd.f32 %v817, %v818
        %v820 = vrot.slane %v407, 4
        %v821 = vadd.f32 %v407, %v820
        %v822 = vrot.slane %v821, 2
        %v823 = vadd.f32 %v821, %v822
        %v824 = vrot.slane %v823, 1
        %v825 = vadd.f32 %v823, %v824
        %v826 = vrot.slane %v408, 4
        %v827 = vadd.f32 %v408, %v826
        %v828 = vrot.slane %v827, 2
        %v829 = vadd.f32 %v827, %v828
        %v830 = vrot.slane %v829, 1
        %v831 = vadd.f32 %v829, %v830
        %v832 = vrot.slane %v409, 4
        %v833 = vadd.f32 %v409, %v832
        %v834 = vrot.slane %v833, 2
        %v835 = vadd.f32 %v833, %v834
        %v836 = vrot.slane %v835, 1
        %v837 = vadd.f32 %v835, %v836
        %v838 = vrot.slane %v410, 4
        %v839 = vadd.f32 %v410, %v838
        %v840 = vrot.slane %v839, 2
        %v841 = vadd.f32 %v839, %v840
        %v842 = vrot.slane %v841, 1
        %v843 = vadd.f32 %v841, %v842
        %v844 = vrot.slane %v411, 4
        %v845 = vadd.f32 %v411, %v844
        %v846 = vrot.slane %v845, 2
        %v847 = vadd.f32 %v845, %v846
        %v848 = vrot.slane %v847, 1
        %v849 = vadd.f32 %v847, %v848
        %v850 = vrot.slane %v412, 4
        %v851 = vadd.f32 %v412, %v850
        %v852 = vrot.slane %v851, 2
        %v853 = vadd.f32 %v851, %v852
        %v854 = vrot.slane %v853, 1
        %v855 = vadd.f32 %v853, %v854
        %v856 = vrot.slane %v413, 4
        %v857 = vadd.f32 %v413, %v856
        %v858 = vrot.slane %v857, 2
        %v859 = vadd.f32 %v857, %v858
        %v860 = vrot.slane %v859, 1
        %v861 = vadd.f32 %v859, %v860
        %v862 = vrot.slane %v414, 4
        %v863 = vadd.f32 %v414, %v862
        %v864 = vrot.slane %v863, 2
        %v865 = vadd.f32 %v863, %v864
        %v866 = vrot.slane %v865, 1
        %v867 = vadd.f32 %v865, %v866
        %v868 = vrot.slane %v415, 4
        %v869 = vadd.f32 %v415, %v868
        %v870 = vrot.slane %v869, 2
        %v871 = vadd.f32 %v869, %v870
        %v872 = vrot.slane %v871, 1
        %v873 = vadd.f32 %v871, %v872
        %v874 = vrot.slane %v416, 4
        %v875 = vadd.f32 %v416, %v874
        %v876 = vrot.slane %v875, 2
        %v877 = vadd.f32 %v875, %v876
        %v878 = vrot.slane %v877, 1
        %v879 = vadd.f32 %v877, %v878
        %v880 = vrot.slane %v417, 4
        %v881 = vadd.f32 %v417, %v880
        %v882 = vrot.slane %v881, 2
        %v883 = vadd.f32 %v881, %v882
        %v884 = vrot.slane %v883, 1
        %v885 = vadd.f32 %v883, %v884
        %v886 = vrot.slane %v418, 4
        %v887 = vadd.f32 %v418, %v886
        %v888 = vrot.slane %v887, 2
        %v889 = vadd.f32 %v887, %v888
        %v890 = vrot.slane %v889, 1
        %v891 = vadd.f32 %v889, %v890
        %v892 = vrot.slane %v419, 4
        %v893 = vadd.f32 %v419, %v892
        %v894 = vrot.slane %v893, 2
        %v895 = vadd.f32 %v893, %v894
        %v896 = vrot.slane %v895, 1
        %v897 = vadd.f32 %v895, %v896
        %v898 = vrot.slane %v420, 4
        %v899 = vadd.f32 %v420, %v898
        %v900 = vrot.slane %v899, 2
        %v901 = vadd.f32 %v899, %v900
        %v902 = vrot.slane %v901, 1
        %v903 = vadd.f32 %v901, %v902
        %v904 = vrot.slane %v421, 4
        %v905 = vadd.f32 %v421, %v904
        %v906 = vrot.slane %v905, 2
        %v907 = vadd.f32 %v905, %v906
        %v908 = vrot.slane %v907, 1
        %v909 = vadd.f32 %v907, %v908
        %v910 = vrot.slane %v422, 4
        %v911 = vadd.f32 %v422, %v910
        %v912 = vrot.slane %v911, 2
        %v913 = vadd.f32 %v911, %v912
        %v914 = vrot.slane %v913, 1
        %v915 = vadd.f32 %v913, %v914
        %v916 = vrot.slane %v423, 4
        %v917 = vadd.f32 %v423, %v916
        %v918 = vrot.slane %v917, 2
        %v919 = vadd.f32 %v917, %v918
        %v920 = vrot.slane %v919, 1
        %v921 = vadd.f32 %v919, %v920
        %v922 = vrot.slane %v424, 4
        %v923 = vadd.f32 %v424, %v922
        %v924 = vrot.slane %v923, 2
        %v925 = vadd.f32 %v923, %v924
        %v926 = vrot.slane %v925, 1
        %v927 = vadd.f32 %v925, %v926
        %v928 = vrot.slane %v425, 4
        %v929 = vadd.f32 %v425, %v928
        %v930 = vrot.slane %v929, 2
        %v931 = vadd.f32 %v929, %v930
        %v932 = vrot.slane %v931, 1
        %v933 = vadd.f32 %v931, %v932
        %v934 = vrot.slane %v426, 4
        %v935 = vadd.f32 %v426, %v934
        %v936 = vrot.slane %v935, 2
        %v937 = vadd.f32 %v935, %v936
        %v938 = vrot.slane %v937, 1
        %v939 = vadd.f32 %v937, %v938
        %v940 = vrot.slane %v427, 4
        %v941 = vadd.f32 %v427, %v940
        %v942 = vrot.slane %v941, 2
        %v943 = vadd.f32 %v941, %v942
        %v944 = vrot.slane %v943, 1
        %v945 = vadd.f32 %v943, %v944
        %v946 = vrot.slane %v428, 4
        %v947 = vadd.f32 %v428, %v946
        %v948 = vrot.slane %v947, 2
        %v949 = vadd.f32 %v947, %v948
        %v950 = vrot.slane %v949, 1
        %v951 = vadd.f32 %v949, %v950
        %v952 = vrot.slane %v429, 4
        %v953 = vadd.f32 %v429, %v952
        %v954 = vrot.slane %v953, 2
        %v955 = vadd.f32 %v953, %v954
        %v956 = vrot.slane %v955, 1
        %v957 = vadd.f32 %v955, %v956
        %v958 = vrot.slane %v430, 4
        %v959 = vadd.f32 %v430, %v958
        %v960 = vrot.slane %v959, 2
        %v961 = vadd.f32 %v959, %v960
        %v962 = vrot.slane %v961, 1
        %v963 = vadd.f32 %v961, %v962
        %v964 = vrot.slane %v431, 4
        %v965 = vadd.f32 %v431, %v964
        %v966 = vrot.slane %v965, 2
        %v967 = vadd.f32 %v965, %v966
        %v968 = vrot.slane %v967, 1
        %v969 = vadd.f32 %v967, %v968
        %v970 = vrot.slane %v432, 4
        %v971 = vadd.f32 %v432, %v970
        %v972 = vrot.slane %v971, 2
        %v973 = vadd.f32 %v971, %v972
        %v974 = vrot.slane %v973, 1
        %v975 = vadd.f32 %v973, %v974
        %v976 = vrot.slane %v433, 4
        %v977 = vadd.f32 %v433, %v976
        %v978 = vrot.slane %v977, 2
        %v979 = vadd.f32 %v977, %v978
        %v980 = vrot.slane %v979, 1
        %v981 = vadd.f32 %v979, %v980
        %v982 = vrot.slane %v434, 4
        %v983 = vadd.f32 %v434, %v982
        %v984 = vrot.slane %v983, 2
        %v985 = vadd.f32 %v983, %v984
        %v986 = vrot.slane %v985, 1
        %v987 = vadd.f32 %v985, %v986
        %v988 = vrot.slane %v435, 4
        %v989 = vadd.f32 %v435, %v988
        %v990 = vrot.slane %v989, 2
        %v991 = vadd.f32 %v989, %v990
        %v992 = vrot.slane %v991, 1
        %v993 = vadd.f32 %v991, %v992
        %v994 = vrot.slane %v436, 4
        %v995 = vadd.f32 %v436, %v994
        %v996 = vrot.slane %v995, 2
        %v997 = vadd.f32 %v995, %v996
        %v998 = vrot.slane %v997, 1
        %v999 = vadd.f32 %v997, %v998
        %v1000 = vrot.slane %v437, 4
        %v1001 = vadd.f32 %v437, %v1000
        %v1002 = vrot.slane %v1001, 2
        %v1003 = vadd.f32 %v1001, %v1002
        %v1004 = vrot.slane %v1003, 1
        %v1005 = vadd.f32 %v1003, %v1004
        %v1006 = vrot.slane %v438, 4
        %v1007 = vadd.f32 %v438, %v1006
        %v1008 = vrot.slane %v1007, 2
        %v1009 = vadd.f32 %v1007, %v1008
        %v1010 = vrot.slane %v1009, 1
        %v1011 = vadd.f32 %v1009, %v1010
        %v1012 = vrot.slane %v439, 4
        %v1013 = vadd.f32 %v439, %v1012
        %v1014 = vrot.slane %v1013, 2
        %v1015 = vadd.f32 %v1013, %v1014
        %v1016 = vrot.slane %v1015, 1
        %v1017 = vadd.f32 %v1015, %v1016
        %v1018 = vrot.slane %v440, 4
        %v1019 = vadd.f32 %v440, %v1018
        %v1020 = vrot.slane %v1019, 2
        %v1021 = vadd.f32 %v1019, %v1020
        %v1022 = vrot.slane %v1021, 1
        %v1023 = vadd.f32 %v1021, %v1022
        %v1024 = vrot.slane %v441, 4
        %v1025 = vadd.f32 %v441, %v1024
        %v1026 = vrot.slane %v1025, 2
        %v1027 = vadd.f32 %v1025, %v1026
        %v1028 = vrot.slane %v1027, 1
        %v1029 = vadd.f32 %v1027, %v1028
        %v1030 = vrot.slane %v442, 4
        %v1031 = vadd.f32 %v442, %v1030
        %v1032 = vrot.slane %v1031, 2
        %v1033 = vadd.f32 %v1031, %v1032
        %v1034 = vrot.slane %v1033, 1
        %v1035 = vadd.f32 %v1033, %v1034
        %v1036 = vrot.slane %v443, 4
        %v1037 = vadd.f32 %v443, %v1036
        %v1038 = vrot.slane %v1037, 2
        %v1039 = vadd.f32 %v1037, %v1038
        %v1040 = vrot.slane %v1039, 1
        %v1041 = vadd.f32 %v1039, %v1040
        %v1042 = vrot.slane %v444, 4
        %v1043 = vadd.f32 %v444, %v1042
        %v1044 = vrot.slane %v1043, 2
        %v1045 = vadd.f32 %v1043, %v1044
        %v1046 = vrot.slane %v1045, 1
        %v1047 = vadd.f32 %v1045, %v1046
        %v1048 = vrot.slane %v445, 4
        %v1049 = vadd.f32 %v445, %v1048
        %v1050 = vrot.slane %v1049, 2
        %v1051 = vadd.f32 %v1049, %v1050
        %v1052 = vrot.slane %v1051, 1
        %v1053 = vadd.f32 %v1051, %v1052
        %v1054 = vrot.slane %v446, 4
        %v1055 = vadd.f32 %v446, %v1054
        %v1056 = vrot.slane %v1055, 2
        %v1057 = vadd.f32 %v1055, %v1056
        %v1058 = vrot.slane %v1057, 1
        %v1059 = vadd.f32 %v1057, %v1058
        %v1060 = vrot.slane %v447, 4
        %v1061 = vadd.f32 %v447, %v1060
        %v1062 = vrot.slane %v1061, 2
        %v1063 = vadd.f32 %v1061, %v1062
        %v1064 = vrot.slane %v1063, 1
        %v1065 = vadd.f32 %v1063, %v1064
        %v1066 = vrot.slane %v448, 4
        %v1067 = vadd.f32 %v448, %v1066
        %v1068 = vrot.slane %v1067, 2
        %v1069 = vadd.f32 %v1067, %v1068
        %v1070 = vrot.slane %v1069, 1
        %v1071 = vadd.f32 %v1069, %v1070
        %v1072 = vrot.slane %v449, 4
        %v1073 = vadd.f32 %v449, %v1072
        %v1074 = vrot.slane %v1073, 2
        %v1075 = vadd.f32 %v1073, %v1074
        %v1076 = vrot.slane %v1075, 1
        %v1077 = vadd.f32 %v1075, %v1076
        %v1078 = vrot.slane %v450, 4
        %v1079 = vadd.f32 %v450, %v1078
        %v1080 = vrot.slane %v1079, 2
        %v1081 = vadd.f32 %v1079, %v1080
        %v1082 = vrot.slane %v1081, 1
        %v1083 = vadd.f32 %v1081, %v1082
        %v1084 = vrot.slane %v451, 4
        %v1085 = vadd.f32 %v451, %v1084
        %v1086 = vrot.slane %v1085, 2
        %v1087 = vadd.f32 %v1085, %v1086
        %v1088 = vrot.slane %v1087, 1
        %v1089 = vadd.f32 %v1087, %v1088
        %v1090 = vrot.slane %v452, 4
        %v1091 = vadd.f32 %v452, %v1090
        %v1092 = vrot.slane %v1091, 2
        %v1093 = vadd.f32 %v1091, %v1092
        %v1094 = vrot.slane %v1093, 1
        %v1095 = vadd.f32 %v1093, %v1094
        %v1096 = vrot.slane %v453, 4
        %v1097 = vadd.f32 %v453, %v1096
        %v1098 = vrot.slane %v1097, 2
        %v1099 = vadd.f32 %v1097, %v1098
        %v1100 = vrot.slane %v1099, 1
        %v1101 = vadd.f32 %v1099, %v1100
        %v1102 = vrot.slane %v454, 4
        %v1103 = vadd.f32 %v454, %v1102
        %v1104 = vrot.slane %v1103, 2
        %v1105 = vadd.f32 %v1103, %v1104
        %v1106 = vrot.slane %v1105, 1
        %v1107 = vadd.f32 %v1105, %v1106
        %v1108 = vrot.slane %v455, 4
        %v1109 = vadd.f32 %v455, %v1108
        %v1110 = vrot.slane %v1109, 2
        %v1111 = vadd.f32 %v1109, %v1110
        %v1112 = vrot.slane %v1111, 1
        %v1113 = vadd.f32 %v1111, %v1112
        %v1114 = vrot.slane %v456, 4
        %v1115 = vadd.f32 %v456, %v1114
        %v1116 = vrot.slane %v1115, 2
        %v1117 = vadd.f32 %v1115, %v1116
        %v1118 = vrot.slane %v1117, 1
        %v1119 = vadd.f32 %v1117, %v1118
        %v1120 = vrot.slane %v457, 4
        %v1121 = vadd.f32 %v457, %v1120
        %v1122 = vrot.slane %v1121, 2
        %v1123 = vadd.f32 %v1121, %v1122
        %v1124 = vrot.slane %v1123, 1
        %v1125 = vadd.f32 %v1123, %v1124
        %v1126 = vrot.slane %v458, 4
        %v1127 = vadd.f32 %v458, %v1126
        %v1128 = vrot.slane %v1127, 2
        %v1129 = vadd.f32 %v1127, %v1128
        %v1130 = vrot.slane %v1129, 1
        %v1131 = vadd.f32 %v1129, %v1130
        %v1132 = vrot.slane %v459, 4
        %v1133 = vadd.f32 %v459, %v1132
        %v1134 = vrot.slane %v1133, 2
        %v1135 = vadd.f32 %v1133, %v1134
        %v1136 = vrot.slane %v1135, 1
        %v1137 = vadd.f32 %v1135, %v1136
        %v1138 = vrot.slane %v460, 4
        %v1139 = vadd.f32 %v460, %v1138
        %v1140 = vrot.slane %v1139, 2
        %v1141 = vadd.f32 %v1139, %v1140
        %v1142 = vrot.slane %v1141, 1
        %v1143 = vadd.f32 %v1141, %v1142
        %v1144 = vrot.slane %v461, 4
        %v1145 = vadd.f32 %v461, %v1144
        %v1146 = vrot.slane %v1145, 2
        %v1147 = vadd.f32 %v1145, %v1146
        %v1148 = vrot.slane %v1147, 1
        %v1149 = vadd.f32 %v1147, %v1148
        %v1150 = vrot.slane %v462, 4
        %v1151 = vadd.f32 %v462, %v1150
        %v1152 = vrot.slane %v1151, 2
        %v1153 = vadd.f32 %v1151, %v1152
        %v1154 = vrot.slane %v1153, 1
        %v1155 = vadd.f32 %v1153, %v1154
        %v1156 = vrot.slane %v463, 4
        %v1157 = vadd.f32 %v463, %v1156
        %v1158 = vrot.slane %v1157, 2
        %v1159 = vadd.f32 %v1157, %v1158
        %v1160 = vrot.slane %v1159, 1
        %v1161 = vadd.f32 %v1159, %v1160
        %v1162 = vrot.slane %v464, 4
        %v1163 = vadd.f32 %v464, %v1162
        %v1164 = vrot.slane %v1163, 2
        %v1165 = vadd.f32 %v1163, %v1164
        %v1166 = vrot.slane %v1165, 1
        %v1167 = vadd.f32 %v1165, %v1166
        %v1168 = vrot.slane %v465, 4
        %v1169 = vadd.f32 %v465, %v1168
        %v1170 = vrot.slane %v1169, 2
        %v1171 = vadd.f32 %v1169, %v1170
        %v1172 = vrot.slane %v1171, 1
        %v1173 = vadd.f32 %v1171, %v1172
        %v1174 = vrot.slane %v466, 4
        %v1175 = vadd.f32 %v466, %v1174
        %v1176 = vrot.slane %v1175, 2
        %v1177 = vadd.f32 %v1175, %v1176
        %v1178 = vrot.slane %v1177, 1
        %v1179 = vadd.f32 %v1177, %v1178
        %v1180 = vrot.slane %v467, 4
        %v1181 = vadd.f32 %v467, %v1180
        %v1182 = vrot.slane %v1181, 2
        %v1183 = vadd.f32 %v1181, %v1182
        %v1184 = vrot.slane %v1183, 1
        %v1185 = vadd.f32 %v1183, %v1184
        %v1186 = vrot.slane %v468, 4
        %v1187 = vadd.f32 %v468, %v1186
        %v1188 = vrot.slane %v1187, 2
        %v1189 = vadd.f32 %v1187, %v1188
        %v1190 = vrot.slane %v1189, 1
        %v1191 = vadd.f32 %v1189, %v1190
        %v1192 = vrot.slane %v469, 4
        %v1193 = vadd.f32 %v469, %v1192
        %v1194 = vrot.slane %v1193, 2
        %v1195 = vadd.f32 %v1193, %v1194
        %v1196 = vrot.slane %v1195, 1
        %v1197 = vadd.f32 %v1195, %v1196
        %v1198 = vrot.slane %v470, 4
        %v1199 = vadd.f32 %v470, %v1198
        %v1200 = vrot.slane %v1199, 2
        %v1201 = vadd.f32 %v1199, %v1200
        %v1202 = vrot.slane %v1201, 1
        %v1203 = vadd.f32 %v1201, %v1202
        %v1204 = vrot.slane %v471, 4
        %v1205 = vadd.f32 %v471, %v1204
        %v1206 = vrot.slane %v1205, 2
        %v1207 = vadd.f32 %v1205, %v1206
        %v1208 = vrot.slane %v1207, 1
        %v1209 = vadd.f32 %v1207, %v1208
        %v1210 = vrot.slane %v472, 4
        %v1211 = vadd.f32 %v472, %v1210
        %v1212 = vrot.slane %v1211, 2
        %v1213 = vadd.f32 %v1211, %v1212
        %v1214 = vrot.slane %v1213, 1
        %v1215 = vadd.f32 %v1213, %v1214
        %v1216 = vrot.slane %v473, 4
        %v1217 = vadd.f32 %v473, %v1216
        %v1218 = vrot.slane %v1217, 2
        %v1219 = vadd.f32 %v1217, %v1218
        %v1220 = vrot.slane %v1219, 1
        %v1221 = vadd.f32 %v1219, %v1220
        %v1222 = vrot.slane %v474, 4
        %v1223 = vadd.f32 %v474, %v1222
        %v1224 = vrot.slane %v1223, 2
        %v1225 = vadd.f32 %v1223, %v1224
        %v1226 = vrot.slane %v1225, 1
        %v1227 = vadd.f32 %v1225, %v1226
        %v1228 = vrot.slane %v475, 4
        %v1229 = vadd.f32 %v475, %v1228
        %v1230 = vrot.slane %v1229, 2
        %v1231 = vadd.f32 %v1229, %v1230
        %v1232 = vrot.slane %v1231, 1
        %v1233 = vadd.f32 %v1231, %v1232
        %v1234 = vrot.slane %v476, 4
        %v1235 = vadd.f32 %v476, %v1234
        %v1236 = vrot.slane %v1235, 2
        %v1237 = vadd.f32 %v1235, %v1236
        %v1238 = vrot.slane %v1237, 1
        %v1239 = vadd.f32 %v1237, %v1238
        %v1240 = vrot.slane %v477, 4
        %v1241 = vadd.f32 %v477, %v1240
        %v1242 = vrot.slane %v1241, 2
        %v1243 = vadd.f32 %v1241, %v1242
        %v1244 = vrot.slane %v1243, 1
        %v1245 = vadd.f32 %v1243, %v1244
        %v1246 = vpack.c.bf16 %v483, %v483
        %v1247 = vpack.c.bf16 %v489, %v489
        %v1248 = vpack.c.bf16 %v495, %v495
        %v1249 = vpack.c.bf16 %v501, %v501
        %v1250 = vpack.c.bf16 %v507, %v507
        %v1251 = vpack.c.bf16 %v513, %v513
        %v1252 = vpack.c.bf16 %v519, %v519
        %v1253 = vpack.c.bf16 %v525, %v525
        %v1254 = vpack.c.bf16 %v531, %v531
        %v1255 = vpack.c.bf16 %v537, %v537
        %v1256 = vpack.c.bf16 %v543, %v543
        %v1257 = vpack.c.bf16 %v549, %v549
        %v1258 = vpack.c.bf16 %v555, %v555
        %v1259 = vpack.c.bf16 %v561, %v561
        %v1260 = vpack.c.bf16 %v567, %v567
        %v1261 = vpack.c.bf16 %v573, %v573
        %v1262 = vpack.c.bf16 %v579, %v579
        %v1263 = vpack.c.bf16 %v585, %v585
        %v1264 = vpack.c.bf16 %v591, %v591
        %v1265 = vpack.c.bf16 %v597, %v597
        %v1266 = vpack.c.bf16 %v603, %v603
        %v1267 = vpack.c.bf16 %v609, %v609
        %v1268 = vpack.c.bf16 %v615, %v615
        %v1269 = vpack.c.bf16 %v621, %v621
        %v1270 = vpack.c.bf16 %v627, %v627
        %v1271 = vpack.c.bf16 %v633, %v633
        %v1272 = vpack.c.bf16 %v639, %v639
        %v1273 = vpack.c.bf16 %v645, %v645
        %v1274 = vpack.c.bf16 %v651, %v651
        %v1275 = vpack.c.bf16 %v657, %v657
        %v1276 = vpack.c.bf16 %v663, %v663
        %v1277 = vpack.c.bf16 %v669, %v669
        %v1278 = vpack.c.bf16 %v675, %v675
        %v1279 = vpack.c.bf16 %v681, %v681
        %v1280 = vpack.c.bf16 %v687, %v687
        %v1281 = vpack.c.bf16 %v693, %v693
        %v1282 = vpack.c.bf16 %v699, %v699
        %v1283 = vpack.c.bf16 %v705, %v705
        %v1284 = vpack.c.bf16 %v711, %v711
        %v1285 = vpack.c.bf16 %v717, %v717
        %v1286 = vpack.c.bf16 %v723, %v723
        %v1287 = vpack.c.bf16 %v729, %v729
        %v1288 = vpack.c.bf16 %v735, %v735
        %v1289 = vpack.c.bf16 %v741, %v741
        %v1290 = vpack.c.bf16 %v747, %v747
        %v1291 = vpack.c.bf16 %v753, %v753
        %v1292 = vpack.c.bf16 %v759, %v759
        %v1293 = vpack.c.bf16 %v765, %v765
        %v1294 = vpack.c.bf16 %v771, %v771
        %v1295 = vpack.c.bf16 %v777, %v777
        %v1296 = vpack.c.bf16 %v783, %v783
        %v1297 = vpack.c.bf16 %v789, %v789
        %v1298 = vpack.c.bf16 %v795, %v795
        %v1299 = vpack.c.bf16 %v801, %v801
        %v1300 = vpack.c.bf16 %v807, %v807
        %v1301 = vpack.c.bf16 %v813, %v813
        %v1302 = vpack.c.bf16 %v819, %v819
        %v1303 = vpack.c.bf16 %v825, %v825
        %v1304 = vpack.c.bf16 %v831, %v831
        %v1305 = vpack.c.bf16 %v837, %v837
        %v1306 = vpack.c.bf16 %v843, %v843
        %v1307 = vpack.c.bf16 %v849, %v849
        %v1308 = vpack.c.bf16 %v855, %v855
        %v1309 = vpack.c.bf16 %v861, %v861
        %v1310 = vpack.c.bf16 %v867, %v867
        %v1311 = vpack.c.bf16 %v873, %v873
        %v1312 = vpack.c.bf16 %v879, %v879
        %v1313 = vpack.c.bf16 %v885, %v885
        %v1314 = vpack.c.bf16 %v891, %v891
        %v1315 = vpack.c.bf16 %v897, %v897
        %v1316 = vpack.c.bf16 %v903, %v903
        %v1317 = vpack.c.bf16 %v909, %v909
        %v1318 = vpack.c.bf16 %v915, %v915
        %v1319 = vpack.c.bf16 %v921, %v921
        %v1320 = vpack.c.bf16 %v927, %v927
        %v1321 = vpack.c.bf16 %v933, %v933
        %v1322 = vpack.c.bf16 %v939, %v939
        %v1323 = vpack.c.bf16 %v945, %v945
        %v1324 = vpack.c.bf16 %v951, %v951
        %v1325 = vpack.c.bf16 %v957, %v957
        %v1326 = vpack.c.bf16 %v963, %v963
        %v1327 = vpack.c.bf16 %v969, %v969
        %v1328 = vpack.c.bf16 %v975, %v975
        %v1329 = vpack.c.bf16 %v981, %v981
        %v1330 = vpack.c.bf16 %v987, %v987
        %v1331 = vpack.c.bf16 %v993, %v993
        %v1332 = vpack.c.bf16 %v999, %v999
        %v1333 = vpack.c.bf16 %v1005, %v1005
        %v1334 = vpack.c.bf16 %v1011, %v1011
        %v1335 = vpack.c.bf16 %v1017, %v1017
        %v1336 = vpack.c.bf16 %v1023, %v1023
        %v1337 = vpack.c.bf16 %v1029, %v1029
        %v1338 = vpack.c.bf16 %v1035, %v1035
        %v1339 = vpack.c.bf16 %v1041, %v1041
        %v1340 = vpack.c.bf16 %v1047, %v1047
        %v1341 = vpack.c.bf16 %v1053, %v1053
        %v1342 = vpack.c.bf16 %v1059, %v1059
        %v1343 = vpack.c.bf16 %v1065, %v1065
        %v1344 = vpack.c.bf16 %v1071, %v1071
        %v1345 = vpack.c.bf16 %v1077, %v1077
        %v1346 = vpack.c.bf16 %v1083, %v1083
        %v1347 = vpack.c.bf16 %v1089, %v1089
        %v1348 = vpack.c.bf16 %v1095, %v1095
        %v1349 = vpack.c.bf16 %v1101, %v1101
        %v1350 = vpack.c.bf16 %v1107, %v1107
        %v1351 = vpack.c.bf16 %v1113, %v1113
        %v1352 = vpack.c.bf16 %v1119, %v1119
        %v1353 = vpack.c.bf16 %v1125, %v1125
        %v1354 = vpack.c.bf16 %v1131, %v1131
        %v1355 = vpack.c.bf16 %v1137, %v1137
        %v1356 = vpack.c.bf16 %v1143, %v1143
        %v1357 = vpack.c.bf16 %v1149, %v1149
        %v1358 = vpack.c.bf16 %v1155, %v1155
        %v1359 = vpack.c.bf16 %v1161, %v1161
        %v1360 = vpack.c.bf16 %v1167, %v1167
        %v1361 = vpack.c.bf16 %v1173, %v1173
        %v1362 = vpack.c.bf16 %v1179, %v1179
        %v1363 = vpack.c.bf16 %v1185, %v1185
        %v1364 = vpack.c.bf16 %v1191, %v1191
        %v1365 = vpack.c.bf16 %v1197, %v1197
        %v1366 = vpack.c.bf16 %v1203, %v1203
        %v1367 = vpack.c.bf16 %v1209, %v1209
        %v1368 = vpack.c.bf16 %v1215, %v1215
        %v1369 = vpack.c.bf16 %v1221, %v1221
        %v1370 = vpack.c.bf16 %v1227, %v1227
        %v1371 = vpack.c.bf16 %v1233, %v1233
        %v1372 = vpack.c.bf16 %v1239, %v1239
        %v1373 = vpack.c.bf16 %v1245, %v1245
        %v1374 = vld [vmem:[#allocation7] sm:$0xf]
        %v1375 = vld [vmem:[#allocation7 + $0x4] sm:$0xf]
        %v1376 = vld [vmem:[#allocation7 + $0x8] sm:$0xf]
        %v1377 = vld [vmem:[#allocation7 + $0xc] sm:$0xf]
        %v1378 = vld [vmem:[#allocation7 + $0x10] sm:$0xf]
        %v1379 = vld [vmem:[#allocation7 + $0x14] sm:$0xf]
        %v1380 = vld [vmem:[#allocation7 + $0x18] sm:$0xf]
        %v1381 = vld [vmem:[#allocation7 + $0x1c] sm:$0xf]
        %v1382 = vld [vmem:[#allocation7 + $0x20] sm:$0xf]
        %v1383 = vld [vmem:[#allocation7 + $0x24] sm:$0xf]
        %v1384 = vld [vmem:[#allocation7 + $0x28] sm:$0xf]
        %v1385 = vld [vmem:[#allocation7 + $0x2c] sm:$0xf]
        %v1386 = vld [vmem:[#allocation7 + $0x30] sm:$0xf]
        %v1387 = vld [vmem:[#allocation7 + $0x34] sm:$0xf]
        %v1388 = vld [vmem:[#allocation7 + $0x38] sm:$0xf]
        %v1389 = vld [vmem:[#allocation7 + $0x3c] sm:$0xf]
        %v1518 = vunpack.c.l.b16 %v1246
        %v1519 = vunpack.c.l.b16 %v1247
        %v1520 = vunpack.c.l.b16 %v1248
        %v1521 = vunpack.c.l.b16 %v1249
        %v1522 = vunpack.c.l.b16 %v1250
        %v1523 = vunpack.c.l.b16 %v1251
        %v1524 = vunpack.c.l.b16 %v1252
        %v1525 = vunpack.c.l.b16 %v1253
        %v1526 = vunpack.c.l.b16 %v1254
        %v1527 = vunpack.c.l.b16 %v1255
        %v1528 = vunpack.c.l.b16 %v1256
        %v1529 = vunpack.c.l.b16 %v1257
        %v1530 = vunpack.c.l.b16 %v1258
        %v1531 = vunpack.c.l.b16 %v1259
        %v1532 = vunpack.c.l.b16 %v1260
        %v1533 = vunpack.c.l.b16 %v1261
        %v1534 = vunpack.c.l.b16 %v1262
        %v1535 = vunpack.c.l.b16 %v1263
        %v1536 = vunpack.c.l.b16 %v1264
        %v1537 = vunpack.c.l.b16 %v1265
        %v1538 = vunpack.c.l.b16 %v1266
        %v1539 = vunpack.c.l.b16 %v1267
        %v1540 = vunpack.c.l.b16 %v1268
        %v1541 = vunpack.c.l.b16 %v1269
        %v1542 = vunpack.c.l.b16 %v1270
        %v1543 = vunpack.c.l.b16 %v1271
        %v1544 = vunpack.c.l.b16 %v1272
        %v1545 = vunpack.c.l.b16 %v1273
        %v1546 = vunpack.c.l.b16 %v1274
        %v1547 = vunpack.c.l.b16 %v1275
        %v1548 = vunpack.c.l.b16 %v1276
        %v1549 = vunpack.c.l.b16 %v1277
        %v1550 = vunpack.c.l.b16 %v1278
        %v1551 = vunpack.c.l.b16 %v1279
        %v1552 = vunpack.c.l.b16 %v1280
        %v1553 = vunpack.c.l.b16 %v1281
        %v1554 = vunpack.c.l.b16 %v1282
        %v1555 = vunpack.c.l.b16 %v1283
        %v1556 = vunpack.c.l.b16 %v1284
        %v1557 = vunpack.c.l.b16 %v1285
        %v1558 = vunpack.c.l.b16 %v1286
        %v1559 = vunpack.c.l.b16 %v1287
        %v1560 = vunpack.c.l.b16 %v1288
        %v1561 = vunpack.c.l.b16 %v1289
        %v1562 = vunpack.c.l.b16 %v1290
        %v1563 = vunpack.c.l.b16 %v1291
        %v1564 = vunpack.c.l.b16 %v1292
        %v1565 = vunpack.c.l.b16 %v1293
        %v1566 = vunpack.c.l.b16 %v1294
        %v1567 = vunpack.c.l.b16 %v1295
        %v1568 = vunpack.c.l.b16 %v1296
        %v1569 = vunpack.c.l.b16 %v1297
        %v1570 = vunpack.c.l.b16 %v1298
        %v1571 = vunpack.c.l.b16 %v1299
        %v1572 = vunpack.c.l.b16 %v1300
        %v1573 = vunpack.c.l.b16 %v1301
        %v1574 = vunpack.c.l.b16 %v1302
        %v1575 = vunpack.c.l.b16 %v1303
        %v1576 = vunpack.c.l.b16 %v1304
        %v1577 = vunpack.c.l.b16 %v1305
        %v1578 = vunpack.c.l.b16 %v1306
        %v1579 = vunpack.c.l.b16 %v1307
        %v1580 = vunpack.c.l.b16 %v1308
        %v1581 = vunpack.c.l.b16 %v1309
        %v1582 = vunpack.c.l.b16 %v1310
        %v1583 = vunpack.c.l.b16 %v1311
        %v1584 = vunpack.c.l.b16 %v1312
        %v1585 = vunpack.c.l.b16 %v1313
        %v1586 = vunpack.c.l.b16 %v1314
        %v1587 = vunpack.c.l.b16 %v1315
        %v1588 = vunpack.c.l.b16 %v1316
        %v1589 = vunpack.c.l.b16 %v1317
        %v1590 = vunpack.c.l.b16 %v1318
        %v1591 = vunpack.c.l.b16 %v1319
        %v1592 = vunpack.c.l.b16 %v1320
        %v1593 = vunpack.c.l.b16 %v1321
        %v1594 = vunpack.c.l.b16 %v1322
        %v1595 = vunpack.c.l.b16 %v1323
        %v1596 = vunpack.c.l.b16 %v1324
        %v1597 = vunpack.c.l.b16 %v1325
        %v1598 = vunpack.c.l.b16 %v1326
        %v1599 = vunpack.c.l.b16 %v1327
        %v1600 = vunpack.c.l.b16 %v1328
        %v1601 = vunpack.c.l.b16 %v1329
        %v1602 = vunpack.c.l.b16 %v1330
        %v1603 = vunpack.c.l.b16 %v1331
        %v1604 = vunpack.c.l.b16 %v1332
        %v1605 = vunpack.c.l.b16 %v1333
        %v1606 = vunpack.c.l.b16 %v1334
        %v1607 = vunpack.c.l.b16 %v1335
        %v1608 = vunpack.c.l.b16 %v1336
        %v1609 = vunpack.c.l.b16 %v1337
        %v1610 = vunpack.c.l.b16 %v1338
        %v1611 = vunpack.c.l.b16 %v1339
        %v1612 = vunpack.c.l.b16 %v1340
        %v1613 = vunpack.c.l.b16 %v1341
        %v1614 = vunpack.c.l.b16 %v1342
        %v1615 = vunpack.c.l.b16 %v1343
        %v1616 = vunpack.c.l.b16 %v1344
        %v1617 = vunpack.c.l.b16 %v1345
        %v1618 = vunpack.c.l.b16 %v1346
        %v1619 = vunpack.c.l.b16 %v1347
        %v1620 = vunpack.c.l.b16 %v1348
        %v1621 = vunpack.c.l.b16 %v1349
        %v1622 = vunpack.c.l.b16 %v1350
        %v1623 = vunpack.c.l.b16 %v1351
        %v1624 = vunpack.c.l.b16 %v1352
        %v1625 = vunpack.c.l.b16 %v1353
        %v1626 = vunpack.c.l.b16 %v1354
        %v1627 = vunpack.c.l.b16 %v1355
        %v1628 = vunpack.c.l.b16 %v1356
        %v1629 = vunpack.c.l.b16 %v1357
        %v1630 = vunpack.c.l.b16 %v1358
        %v1631 = vunpack.c.l.b16 %v1359
        %v1632 = vunpack.c.l.b16 %v1360
        %v1633 = vunpack.c.l.b16 %v1361
        %v1634 = vunpack.c.l.b16 %v1362
        %v1635 = vunpack.c.l.b16 %v1363
        %v1636 = vunpack.c.l.b16 %v1364
        %v1637 = vunpack.c.l.b16 %v1365
        %v1638 = vunpack.c.l.b16 %v1366
        %v1639 = vunpack.c.l.b16 %v1367
        %v1640 = vunpack.c.l.b16 %v1368
        %v1641 = vunpack.c.l.b16 %v1369
        %v1642 = vunpack.c.l.b16 %v1370
        %v1643 = vunpack.c.l.b16 %v1371
        %v1644 = vunpack.c.l.b16 %v1372
        %v1645 = vunpack.c.l.b16 %v1373
        %vm1646 = vcmask 1041409
        %v1647 = vsel %vm1646, %v1519, %v1518
        %vm1648 = vcmask 1042434
        %v1649 = vsel %vm1648, %v1520, %v1647
        %vm1650 = vcmask 1043459
        %v1651 = vsel %vm1650, %v1521, %v1649
        %vm1652 = vcmask 1044484
        %v1653 = vsel %vm1652, %v1522, %v1651
        %vm1654 = vcmask 1045509
        %v1655 = vsel %vm1654, %v1523, %v1653
        %vm1656 = vcmask 1046534
        %v1657 = vsel %vm1656, %v1524, %v1655
        %vm1658 = vcmask 1047559
        %v1659 = vsel %vm1658, %v1525, %v1657
        %v1660 = vsel %vm1646, %v1527, %v1526
        %v1661 = vsel %vm1648, %v1528, %v1660
        %v1662 = vsel %vm1650, %v1529, %v1661
        %v1663 = vsel %vm1652, %v1530, %v1662
        %v1664 = vsel %vm1654, %v1531, %v1663
        %v1665 = vsel %vm1656, %v1532, %v1664
        %v1666 = vsel %vm1658, %v1533, %v1665
        %v1667 = vsel %vm1646, %v1535, %v1534
        %v1668 = vsel %vm1648, %v1536, %v1667
        %v1669 = vsel %vm1650, %v1537, %v1668
        %v1670 = vsel %vm1652, %v1538, %v1669
        %v1671 = vsel %vm1654, %v1539, %v1670
        %v1672 = vsel %vm1656, %v1540, %v1671
        %v1673 = vsel %vm1658, %v1541, %v1672
        %v1674 = vsel %vm1646, %v1543, %v1542
        %v1675 = vsel %vm1648, %v1544, %v1674
        %v1676 = vsel %vm1650, %v1545, %v1675
        %v1677 = vsel %vm1652, %v1546, %v1676
        %v1678 = vsel %vm1654, %v1547, %v1677
        %v1679 = vsel %vm1656, %v1548, %v1678
        %v1680 = vsel %vm1658, %v1549, %v1679
        %v1681 = vsel %vm1646, %v1551, %v1550
        %v1682 = vsel %vm1648, %v1552, %v1681
        %v1683 = vsel %vm1650, %v1553, %v1682
        %v1684 = vsel %vm1652, %v1554, %v1683
        %v1685 = vsel %vm1654, %v1555, %v1684
        %v1686 = vsel %vm1656, %v1556, %v1685
        %v1687 = vsel %vm1658, %v1557, %v1686
        %v1688 = vsel %vm1646, %v1559, %v1558
        %v1689 = vsel %vm1648, %v1560, %v1688
        %v1690 = vsel %vm1650, %v1561, %v1689
        %v1691 = vsel %vm1652, %v1562, %v1690
        %v1692 = vsel %vm1654, %v1563, %v1691
        %v1693 = vsel %vm1656, %v1564, %v1692
        %v1694 = vsel %vm1658, %v1565, %v1693
        %v1695 = vsel %vm1646, %v1567, %v1566
        %v1696 = vsel %vm1648, %v1568, %v1695
        %v1697 = vsel %vm1650, %v1569, %v1696
        %v1698 = vsel %vm1652, %v1570, %v1697
        %v1699 = vsel %vm1654, %v1571, %v1698
        %v1700 = vsel %vm1656, %v1572, %v1699
        %v1701 = vsel %vm1658, %v1573, %v1700
        %v1702 = vsel %vm1646, %v1575, %v1574
        %v1703 = vsel %vm1648, %v1576, %v1702
        %v1704 = vsel %vm1650, %v1577, %v1703
        %v1705 = vsel %vm1652, %v1578, %v1704
        %v1706 = vsel %vm1654, %v1579, %v1705
        %v1707 = vsel %vm1656, %v1580, %v1706
        %v1708 = vsel %vm1658, %v1581, %v1707
        %v1709 = vsel %vm1646, %v1583, %v1582
        %v1710 = vsel %vm1648, %v1584, %v1709
        %v1711 = vsel %vm1650, %v1585, %v1710
        %v1712 = vsel %vm1652, %v1586, %v1711
        %v1713 = vsel %vm1654, %v1587, %v1712
        %v1714 = vsel %vm1656, %v1588, %v1713
        %v1715 = vsel %vm1658, %v1589, %v1714
        %v1716 = vsel %vm1646, %v1591, %v1590
        %v1717 = vsel %vm1648, %v1592, %v1716
        %v1718 = vsel %vm1650, %v1593, %v1717
        %v1719 = vsel %vm1652, %v1594, %v1718
        %v1720 = vsel %vm1654, %v1595, %v1719
        %v1721 = vsel %vm1656, %v1596, %v1720
        %v1722 = vsel %vm1658, %v1597, %v1721
        %v1723 = vsel %vm1646, %v1599, %v1598
        %v1724 = vsel %vm1648, %v1600, %v1723
        %v1725 = vsel %vm1650, %v1601, %v1724
        %v1726 = vsel %vm1652, %v1602, %v1725
        %v1727 = vsel %vm1654, %v1603, %v1726
        %v1728 = vsel %vm1656, %v1604, %v1727
        %v1729 = vsel %vm1658, %v1605, %v1728
        %v1730 = vsel %vm1646, %v1607, %v1606
        %v1731 = vsel %vm1648, %v1608, %v1730
        %v1732 = vsel %vm1650, %v1609, %v1731
        %v1733 = vsel %vm1652, %v1610, %v1732
        %v1734 = vsel %vm1654, %v1611, %v1733
        %v1735 = vsel %vm1656, %v1612, %v1734
        %v1736 = vsel %vm1658, %v1613, %v1735
        %v1737 = vsel %vm1646, %v1615, %v1614
        %v1738 = vsel %vm1648, %v1616, %v1737
        %v1739 = vsel %vm1650, %v1617, %v1738
        %v1740 = vsel %vm1652, %v1618, %v1739
        %v1741 = vsel %vm1654, %v1619, %v1740
        %v1742 = vsel %vm1656, %v1620, %v1741
        %v1743 = vsel %vm1658, %v1621, %v1742
        %v1744 = vsel %vm1646, %v1623, %v1622
        %v1745 = vsel %vm1648, %v1624, %v1744
        %v1746 = vsel %vm1650, %v1625, %v1745
        %v1747 = vsel %vm1652, %v1626, %v1746
        %v1748 = vsel %vm1654, %v1627, %v1747
        %v1749 = vsel %vm1656, %v1628, %v1748
        %v1750 = vsel %vm1658, %v1629, %v1749
        %v1751 = vsel %vm1646, %v1631, %v1630
        %v1752 = vsel %vm1648, %v1632, %v1751
        %v1753 = vsel %vm1650, %v1633, %v1752
        %v1754 = vsel %vm1652, %v1634, %v1753
        %v1755 = vsel %vm1654, %v1635, %v1754
        %v1756 = vsel %vm1656, %v1636, %v1755
        %v1757 = vsel %vm1658, %v1637, %v1756
        %v1758 = vsel %vm1646, %v1639, %v1638
        %v1759 = vsel %vm1648, %v1640, %v1758
        %v1760 = vsel %vm1650, %v1641, %v1759
        %v1761 = vsel %vm1652, %v1642, %v1760
        %v1762 = vsel %vm1654, %v1643, %v1761
        %v1763 = vsel %vm1656, %v1644, %v1762
        %v1764 = vsel %vm1658, %v1645, %v1763
        %v1765 = vpack.c.b16 %v1666, %v1659
        %v1766 = vpack.c.b16 %v1680, %v1673
        %v1767 = vpack.c.b16 %v1694, %v1687
        %v1768 = vpack.c.b16 %v1708, %v1701
        %v1769 = vpack.c.b16 %v1722, %v1715
        %v1770 = vpack.c.b16 %v1736, %v1729
        %v1771 = vpack.c.b16 %v1750, %v1743
        %v1772 = vpack.c.b16 %v1764, %v1757
        %v1797 = vunpack.c.l.b16 %v1374
        %v1798 = vunpack.c.l.b16 %v1375
        %v1799 = vunpack.c.l.b16 %v1376
        %v1800 = vunpack.c.l.b16 %v1377
        %v1801 = vunpack.c.l.b16 %v1378
        %v1802 = vunpack.c.l.b16 %v1379
        %v1803 = vunpack.c.l.b16 %v1380
        %v1804 = vunpack.c.l.b16 %v1381
        %v1805 = vunpack.c.l.b16 %v1382
        %v1806 = vunpack.c.l.b16 %v1383
        %v1807 = vunpack.c.l.b16 %v1384
        %v1808 = vunpack.c.l.b16 %v1385
        %v1809 = vunpack.c.l.b16 %v1386
        %v1810 = vunpack.c.l.b16 %v1387
        %v1811 = vunpack.c.l.b16 %v1388
        %v1812 = vunpack.c.l.b16 %v1389
        %v1813 = vpack.c.b16 %v1798, %v1797
        %v1814 = vpack.c.b16 %v1800, %v1799
        %v1815 = vpack.c.b16 %v1802, %v1801
        %v1816 = vpack.c.b16 %v1804, %v1803
        %v1817 = vpack.c.b16 %v1806, %v1805
        %v1818 = vpack.c.b16 %v1808, %v1807
        %v1819 = vpack.c.b16 %v1810, %v1809
        %v1820 = vpack.c.b16 %v1812, %v1811
        %1829 = vmatpush.bf16.msra.mxu0 %v1820
        %1830 = vmatpush.bf16.msra.mxu0 %v1819
        %1831 = vmatpush.bf16.msra.mxu0 %v1818
        %1832 = vmatpush.bf16.msra.mxu0 %v1817
        %1833 = vmatpush.bf16.msra.mxu0 %v1816
        %1834 = vmatpush.bf16.msra.mxu0 %v1815
        %1835 = vmatpush.bf16.msra.mxu0 %v1814
        %1836 = vmatpush.bf16.msra.mxu0 %v1813
        %1837 = vmatmul.bf16.gmra.mxu0 %v1765
        %v1838 = vpop.f32.mrf.mxu0
        %v1839 = vadd.f32 0.0, %v1838
        %v1840 = vpop.f32.mrf.mxu0
        %v1841 = vadd.f32 0.0, %v1840
        %1842 = vmatmul.bf16.gmra.mxu0 %v1766
        %v1843 = vpop.f32.mrf.mxu0
        %v1844 = vadd.f32 0.0, %v1843
        %v1845 = vpop.f32.mrf.mxu0
        %v1846 = vadd.f32 0.0, %v1845
        %1847 = vmatmul.bf16.gmra.mxu0 %v1767
        %v1848 = vpop.f32.mrf.mxu0
        %v1849 = vadd.f32 0.0, %v1848
        %v1850 = vpop.f32.mrf.mxu0
        %v1851 = vadd.f32 0.0, %v1850
        %1852 = vmatmul.bf16.gmra.mxu0 %v1768
        %v1853 = vpop.f32.mrf.mxu0
        %v1854 = vadd.f32 0.0, %v1853
        %v1855 = vpop.f32.mrf.mxu0
        %v1856 = vadd.f32 0.0, %v1855
        %1857 = vmatmul.bf16.gmra.mxu0 %v1769
        %v1858 = vpop.f32.mrf.mxu0
        %v1859 = vadd.f32 0.0, %v1858
        %v1860 = vpop.f32.mrf.mxu0
        %v1861 = vadd.f32 0.0, %v1860
        %1862 = vmatmul.bf16.gmra.mxu0 %v1770
        %v1863 = vpop.f32.mrf.mxu0
        %v1864 = vadd.f32 0.0, %v1863
        %v1865 = vpop.f32.mrf.mxu0
        %v1866 = vadd.f32 0.0, %v1865
        %1867 = vmatmul.bf16.gmra.mxu0 %v1771
        %v1868 = vpop.f32.mrf.mxu0
        %v1869 = vadd.f32 0.0, %v1868
        %v1870 = vpop.f32.mrf.mxu0
        %v1871 = vadd.f32 0.0, %v1870
        %1872 = vmatmul.bf16.gmra.mxu0 %v1772
        %v1873 = vpop.f32.mrf.mxu0
        %v1874 = vadd.f32 0.0, %v1873
        %v1875 = vpop.f32.mrf.mxu0
        %v1876 = vadd.f32 0.0, %v1875
        %1877 = vdwg.mxu0
        %v1878 = vld [vmem:[#allocation5] sm:$0x1]
        %v1879 = vmul.f32 %v1878, %v1878
        %vm1880 = vcmask 1040384
        %v1881 = vsel %vm1880, %v1879, 0.0
        %1882 = vadd.xlane.f32.xlu0 %v1881
        %v1883 = vpop.xlane.xlu0 %1882
        %1884 = vmatpush.xpose.msra.mxu0 %v1876
        %1885 = vmatpush.xpose.msra.mxu0 %v1874
        %1886 = vmatpush.xpose.msra.mxu0 %v1871
        %1887 = vmatpush.xpose.msra.mxu0 %v1869
        %1888 = vmatpush.xpose.msra.mxu0 %v1866
        %1889 = vmatpush.xpose.msra.mxu0 %v1864
        %1890 = vmatpush.xpose.msra.mxu0 %v1861
        %1891 = vmatpush.xpose.msra.mxu0 %v1859
        %1892 = vmatpush.xpose.msra.mxu0 %v1856
        %1893 = vmatpush.xpose.msra.mxu0 %v1854
        %1894 = vmatpush.xpose.msra.mxu0 %v1851
        %1895 = vmatpush.xpose.msra.mxu0 %v1849
        %1896 = vmatpush.xpose.msra.mxu0 %v1846
        %1897 = vmatpush.xpose.msra.mxu0 %v1844
        %1898 = vmatpush.xpose.msra.mxu0 %v1841
        %1899 = vmatpush.xpose.msra.mxu0 %v1839
        %1900 = vmatmul.f32.gmra.mxu0 %v1878
        %v1901 = vpop.f32.mrf.mxu0
        %v1902 = vadd.f32 0.0, %v1901
        %1903 = vdwg.mxu0
        %v1904 = vmul.f32 %v1839, %v1839
        %v1905 = vmul.f32 %v1841, %v1841
        %v1906 = vmul.f32 %v1844, %v1844
        %v1907 = vmul.f32 %v1846, %v1846
        %v1908 = vmul.f32 %v1849, %v1849
        %v1909 = vmul.f32 %v1851, %v1851
        %v1910 = vmul.f32 %v1854, %v1854
        %v1911 = vmul.f32 %v1856, %v1856
        %v1912 = vmul.f32 %v1859, %v1859
        %v1913 = vmul.f32 %v1861, %v1861
        %v1914 = vmul.f32 %v1864, %v1864
        %v1915 = vmul.f32 %v1866, %v1866
        %v1916 = vmul.f32 %v1869, %v1869
        %v1917 = vmul.f32 %v1871, %v1871
        %v1918 = vmul.f32 %v1874, %v1874
        %v1919 = vmul.f32 %v1876, %v1876
        %1920 = vmatpush.xpose.msra.mxu0 %v1919
        %1921 = vmatpush.xpose.msra.mxu0 %v1918
        %1922 = vmatpush.xpose.msra.mxu0 %v1917
        %1923 = vmatpush.xpose.msra.mxu0 %v1916
        %1924 = vmatpush.xpose.msra.mxu0 %v1915
        %1925 = vmatpush.xpose.msra.mxu0 %v1914
        %1926 = vmatpush.xpose.msra.mxu0 %v1913
        %1927 = vmatpush.xpose.msra.mxu0 %v1912
        %1928 = vmatpush.xpose.msra.mxu0 %v1911
        %1929 = vmatpush.xpose.msra.mxu0 %v1910
        %1930 = vmatpush.xpose.msra.mxu0 %v1909
        %1931 = vmatpush.xpose.msra.mxu0 %v1908
        %1932 = vmatpush.xpose.msra.mxu0 %v1907
        %1933 = vmatpush.xpose.msra.mxu0 %v1906
        %1934 = vmatpush.xpose.msra.mxu0 %v1905
        %1935 = vmatpush.xpose.msra.mxu0 %v1904
        %1936 = vmatmul.f32.gmra.mxu0 1.0
        %v1937 = vpop.f32.mrf.mxu0
        %v1938 = vadd.f32 0.0, %v1937
        %1939 = vdwg.mxu0
        %v1940 = vmul.f32 %v1938, %v1883
        %v1941 = vmax.f32 %v1940, 1e-16
        %v1942 = vrsqrt.pop %v1941
        %v1943 = vmul.f32 %v1942, %v1941
        %v1944 = vmul.f32 %v1943, %v1942
        %v1945 = vmul.f32 0.5, %v1944
        %v1946 = vsub.f32 1.5, %v1945
        %v1947 = vmul.f32 %v1942, %v1946
        %vm1948 = vweird.f32 %v1941
        %vm1949 = vweird.f32 %v1942
        %vm1950 = vmor %vm1948, %vm1949
        %v1951 = vsel %vm1950, %v1942, %v1947
        %v1952 = vmul.f32 %v1902, %v1951
        %1953 = vst [vmem:[%s220] sm:$0x1] %v1952
        %s1954 = sand.u32 %s97, 1
        %s1955 = scalar_lea.sflag [#allocation4], %s1954
        %s1956 = sand.u32 %s97, 1
        %s1957 = scalar_lea.vmem [#allocation8], %s1956
        // Predicated region
        $region45: #{tpu_custom_call.1} parent=31 // pred_check
          %p1958 = pneg %p107
        $region46: #{tpu_custom_call.1} parent=31 // pred_check_branch
          %1960 = sbr.rel (%p1958) target = $region48
        $region47: #{tpu_custom_call.1} parent=31 // pred_region
          %1962 = vsyncadd %s1955, 0
          %s1963 = scalar_lea.hbm %s3, %s21
          %s1965 = sshll.u32 %s1957, 4
          %s1966 = int_to_ptr.vmem [resolvable:$true] %s1965
          %s1967 = sshll.u32 %s1963, 4
          %s1968 = int_to_ptr.hbm [resolvable:$true] %s1967
          %1970 = dma.vmem_to_hbm [thread:$0]  %s1966, 16, %s1968, %s1955
        $region48: #{tpu_custom_call.1} parent=31 // pred_fallthru
          _
      $region32: #{tpu_custom_call.1} parent=5 // pred_fallthru
        _
      %p1971 = scmp.le.s32.totalorder 2, %s16
      // Predicated region
      $region49: #{tpu_custom_call.1} parent=5 // pred_check
        %p1972 = pneg %p1971
      $region50: #{tpu_custom_call.1} parent=5 // pred_check_branch
        %1974 = sbr.rel (%p1972) target = $region52
      $region51: #{tpu_custom_call.1} parent=5 // pred_region
        %s1975 = ssub.s32 %s16, 2
        // Predicated region
        $region53: #{tpu_custom_call.1} parent=51 // pred_check
          %p1976 = pneg %p113
        $region54: #{tpu_custom_call.1} parent=51 // pred_check_branch
          %1978 = sbr.rel (%p1976) target = $region56
        $region55: #{tpu_custom_call.1} parent=51 // pred_region
          %s1979 = sand.u32 %s98, 1
          %s1980 = scalar_lea.sflag [#allocation4], %s1979
          %s1981 = sand.u32 %s98, 1
          %s1982 = scalar_lea.vmem [#allocation8], %s1981
          %1984 = dma.done %s1980, 16
        $region56: #{tpu_custom_call.1} parent=51 // pred_fallthru
          _
      $region52: #{tpu_custom_call.1} parent=5 // pred_fallthru
        _
    $region6: #{tpu_custom_call.1} parent=1 // loop_footer
      %s20 = sadd.s32 1, %s16
    $region7: #{tpu_custom_call.1} parent=1 // loop_footer_branch
      %15 = sbr.rel target = $region3
    $region8: #{tpu_custom_call.1} parent=1 // loop_exit
      _
    %1985 = vsyncpa [#allocation3], 1
    %s1986 = scalar_lea.sflag [#allocation3], 1
    %1987 = vsyncpa %s1986, 1
    %1988 = vsyncpa [#allocation6], 1
    %1989 = vsyncpa [#allocation4], 1
    %s1990 = scalar_lea.sflag [#allocation4], 1
    %1991 = vsyncpa %s1990, 1

</llo_original>
